<compile_context>
chip_gen: v7x
topology: tpu7x:2x2x1
jax: 0.10.0
libtpu: 0.0.40
codegen_flags: <defaults>
</compile_context>

<pallas_src>
import jax
import jax.numpy as jnp
from jax.experimental import pallas as pl
from jax.experimental.pallas import tpu as pltpu

BN_EPS = 1e-5
LANE = 128


def _round_up(x, m):
    return ((x + m - 1) // m) * m


def _vmem_limit_bytes(block_bytes):
    # Generation-aware cap: ~3/4 of physical VMEM (96 MiB on v5e/v6e which
    # have 128 MiB, 48 MiB on v7x which has 64 MiB).  Conservative fallback.
    try:
        info = pltpu.get_tpu_info()
        cap = int(getattr(info, "vmem_capacity_bytes", 64 << 20))
    except Exception:
        cap = 64 << 20
    cap = (cap * 3) // 4
    est = int(2 * block_bytes * 1.5) + (8 << 20)   # double-buffer + headroom
    return max(16 << 20, min(est, cap))


# --------------------------------------------------------------------------
# Pass 1: message passing (sum aggregation, bf16 MXU) + (1+eps) scale + MLP
# + graph norm.  Emits bf16 pre-BN activations and per-tile BN partials.
# --------------------------------------------------------------------------
def _gin_mp_mlp_kernel(eps_ref, adj_ref, hb_ref, h_ref, snorm_ref,
                       w1_ref, b1_ref, w2_ref, b2_ref, y_ref, stats_ref):
    one_plus_eps = 1.0 + eps_ref[0]

    # int8 {0,1} adjacency -> bf16 (lossless); bf16 x bf16 on the MXU with
    # f32 accumulation.  This is the O(N^2) aggregation term.
    adj = adj_ref[...].astype(jnp.bfloat16)                       # (tile, N)
    neigh = jnp.dot(adj, hb_ref[...], preferred_element_type=jnp.float32)

    # (1 + eps) * h uses the f32 tile of h (full-precision pointwise term).
    u = one_plus_eps * h_ref[...] + neigh                          # (tile, Dp)

    # apply_func MLP: Linear -> ReLU -> Linear (f32, lane-padded to 128).
    y = jnp.dot(u, w1_ref[...], preferred_element_type=jnp.float32) + b1_ref[...]
    y = jnp.maximum(y, 0.0)
    y = jnp.dot(y, w2_ref[...], preferred_element_type=jnp.float32) + b2_ref[...]

    # graph norm: per-node scale (broadcast over features).
    y = y * snorm_ref[...]                                         # (tile, Dp)

    # Per-tile BN partial statistics in f32 *before* the bf16 downcast.
    # Single (8, Dp) output block: sublane 0 = sum, sublane 1 = sum of squares.
    s = jnp.sum(y, axis=0, keepdims=True)                          # (1, Dp)
    ss = jnp.sum(y * y, axis=0, keepdims=True)                     # (1, Dp)
    row = jax.lax.broadcasted_iota(jnp.int32, stats_ref.shape, 0)
    stats_ref[...] = jnp.where(row == 0, s, 0.0) + jnp.where(row == 1, ss, 0.0)

    # bf16 intermediate halves the N*Dp write and pass-2 re-read.
    y_ref[...] = y.astype(y_ref.dtype)


# --------------------------------------------------------------------------
# Pass 2: streaming BN affine (precomputed scale/shift) + ReLU + residual.
# --------------------------------------------------------------------------
def _gin_bn_relu_res_kernel(y_ref, h_ref, scale_ref, shift_ref, out_ref):
    y = y_ref[...].astype(jnp.float32) * scale_ref[...] + shift_ref[...]
    y = jnp.maximum(y, 0.0)                                        # ReLU
    # residual (in_dim == out_dim)
    out_ref[...] = (y + h_ref[...]).astype(out_ref.dtype)


def gin_layer(adj, h, snorm_n, params, eps=0.0, tile_rows=None):
    """adj: (N,N) {0,1}, h: (N,D) f32, snorm_n: (N,1) f32."""
    N, D = h.shape
    w1, b1, w2, b2, gamma, beta = params
    H = w1.shape[1]

    # ---- lane padding of feature dims to 128 ----
    Dp = _round_up(max(D, LANE), LANE)
    Hp = _round_up(max(H, LANE), LANE)

    # ---- row tile selection: prefer big tiles (full MXU, fewer grid steps) ----
    if tile_rows is None:
        for cand in (512, 256, 128, 64, 32):
            if N % cand == 0:
                tile_rows = cand
                break
        else:
            raise ValueError("number of nodes must be a multiple of 32")
    assert N % tile_rows == 0
    num_tiles = N // tile_rows

    # ---- host-side packing ----
    adj_i8 = adj.astype(jnp.int8)                                  # exact 0/1
    h_f32 = jnp.pad(h.astype(jnp.float32), ((0, 0), (0, Dp - D)))
    h_bf16 = h_f32.astype(jnp.bfloat16)                            # for the MXU
    w1_p = jnp.pad(w1.astype(jnp.float32), ((0, Dp - D), (0, Hp - H)))
    b1_p = jnp.pad(b1.reshape(1, -1).astype(jnp.float32), ((0, 0), (0, Hp - H)))
    w2_p = jnp.pad(w2.astype(jnp.float32), ((0, Hp - H), (0, Dp - D)))
    b2_p = jnp.pad(b2.reshape(1, -1).astype(jnp.float32), ((0, 0), (0, Dp - D)))
    gamma_p = jnp.pad(gamma.reshape(1, -1).astype(jnp.float32), ((0, 0), (0, Dp - D)))
    beta_p = jnp.pad(beta.reshape(1, -1).astype(jnp.float32), ((0, 0), (0, Dp - D)))
    snorm = snorm_n.astype(jnp.float32)
    eps_arr = jnp.asarray([eps], dtype=jnp.float32)

    # ---- pass 1: aggregation + MLP + graph norm + BN partial stats ----
    blk1_bytes = (tile_rows * N * 1          # adj tile (int8)
                  + N * Dp * 2               # resident bf16 h
                  + tile_rows * Dp * 4       # f32 h tile
                  + Dp * Hp * 4 + Hp * Dp * 4 + Hp * 4 + Dp * 4
                  + tile_rows * 4            # snorm tile
                  + tile_rows * Dp * 2       # bf16 y out tile
                  + 8 * Dp * 4)              # stats out tile
    cost1 = pl.CostEstimate(
        flops=2 * N * N * Dp + 4 * N * Dp * Hp,
        transcendentals=0,
        bytes_accessed=(N * N * 1 + N * Dp * (2 + 4 + 2)
                        + Dp * Hp * 4 + Hp * Dp * 4
                        + num_tiles * 8 * Dp * 4),
    )

    y_pre, stats = pl.pallas_call(
        _gin_mp_mlp_kernel,
        grid=(num_tiles,),
        out_shape=(
            jax.ShapeDtypeStruct((N, Dp), jnp.bfloat16),
            jax.ShapeDtypeStruct((num_tiles * 8, Dp), jnp.float32),
        ),
        in_specs=[
            pl.BlockSpec(memory_space=pltpu.MemorySpace.SMEM),        # eps
            pl.BlockSpec((tile_rows, N), lambda i: (i, 0)),           # adj tile (int8)
            pl.BlockSpec((N, Dp), lambda i: (0, 0)),                  # h bf16 (resident)
            pl.BlockSpec((tile_rows, Dp), lambda i: (i, 0)),          # h f32 tile
            pl.BlockSpec((tile_rows, 1), lambda i: (i, 0)),           # snorm tile
            pl.BlockSpec((Dp, Hp), lambda i: (0, 0)),                 # w1
            pl.BlockSpec((1, Hp), lambda i: (0, 0)),                  # b1
            pl.BlockSpec((Hp, Dp), lambda i: (0, 0)),                 # w2
            pl.BlockSpec((1, Dp), lambda i: (0, 0)),                  # b2
        ],
        out_specs=(
            pl.BlockSpec((tile_rows, Dp), lambda i: (i, 0)),          # bf16 pre-BN y
            pl.BlockSpec((8, Dp), lambda i: (i, 0)),                  # BN partials
        ),
        compiler_params=pltpu.CompilerParams(
            dimension_semantics=("parallel",),
            vmem_limit_bytes=_vmem_limit_bytes(blk1_bytes),
        ),
        cost_estimate=cost1,
    )(eps_arr, adj_i8, h_bf16, h_f32, snorm, w1_p, b1_p, w2_p, b2_p)

    # ---- tiny global BN reduction, done once (num_tiles x Dp elements) ----
    stats = stats.reshape(num_tiles, 8, Dp)
    total = jnp.sum(stats[:, 0, :], axis=0)                           # (Dp,)
    total_sq = jnp.sum(stats[:, 1, :], axis=0)                        # (Dp,)
    mean = total / N
    # TODO(synk): E[x^2]-E[x]^2 in f32 can cancel for very large N / large
    # activation means; switch to Welford-style (count, mean, M2) partials then.
    var = jnp.maximum(total_sq / N - mean * mean, 0.0)
    inv_std = jax.lax.rsqrt(var + BN_EPS)
    scale = (gamma_p[0] * inv_std).reshape(1, Dp)
    shift = (beta_p[0] - mean * gamma_p[0] * inv_std).reshape(1, Dp)

    # ---- pass 2: streaming BN affine + ReLU + residual ----
    blk2_bytes = (tile_rows * Dp * 2 + 2 * tile_rows * Dp * 4 + 2 * Dp * 4)
    cost2 = pl.CostEstimate(
        flops=4 * N * Dp,
        transcendentals=0,
        bytes_accessed=N * Dp * (2 + 4 + 4) + 2 * Dp * 4,
    )

    out_p = pl.pallas_call(
        _gin_bn_relu_res_kernel,
        grid=(num_tiles,),
        out_shape=jax.ShapeDtypeStruct((N, Dp), jnp.float32),
        in_specs=[
            pl.BlockSpec((tile_rows, Dp), lambda i: (i, 0)),          # y tile (bf16)
            pl.BlockSpec((tile_rows, Dp), lambda i: (i, 0)),          # h tile (residual)
            pl.BlockSpec((1, Dp), lambda i: (0, 0)),                  # scale
            pl.BlockSpec((1, Dp), lambda i: (0, 0)),                  # shift
        ],
        out_specs=pl.BlockSpec((tile_rows, Dp), lambda i: (i, 0)),
        compiler_params=pltpu.CompilerParams(
            dimension_semantics=("parallel",),
            vmem_limit_bytes=_vmem_limit_bytes(blk2_bytes),
        ),
        cost_estimate=cost2,
    )(y_pre, h_f32, scale, shift)

    # TODO(synk): F.dropout uses torch RNG -> identity (p=0 / eval semantics);
    # BatchNorm running_mean/var buffers are not updated (pure forward).
    return out_p[:, :D]


def reference(adj, h, snorm_n, params, eps=0.0):
    w1, b1, w2, b2, gamma, beta = params
    neigh = adj @ h
    u = (1.0 + eps) * h + neigh
    y = jnp.maximum(u @ w1 + b1, 0.0) @ w2 + b2
    y = y * snorm_n
    mean = jnp.mean(y, axis=0, keepdims=True)
    var = jnp.mean((y - mean) ** 2, axis=0, keepdims=True)
    y = (y - mean) * jax.lax.rsqrt(var + BN_EPS) * gamma + beta
    y = jnp.maximum(y, 0.0)
    return y + h


if __name__ == "__main__":
    N = 384         # nodes (-> 128-row tiles, grid of 3; exercises multi-tile stats)
    D_IN = 32       # in_dim == out_dim (residual active)
    HIDDEN = 64     # MLP hidden dim

    key = jax.random.PRNGKey(0)
    k_h, k_adj, k_w1, k_b1, k_w2, k_b2 = jax.random.split(key, 6)

    h = jax.random.normal(k_h, (N, D_IN), dtype=jnp.float32)

    # deterministic random directed graph, no self loops, A[dst, src] = 1
    adj = (jax.random.uniform(k_adj, (N, N)) < 0.1).astype(jnp.float32)
    adj = adj * (1.0 - jnp.eye(N, dtype=jnp.float32))

    # graph-size normalization (single graph of N nodes)
    snorm_n = jnp.full((N, 1), 1.0 / jnp.sqrt(jnp.float32(N)), dtype=jnp.float32)

    # MLP + BatchNorm parameters (deterministic init)
    w1 = jax.random.normal(k_w1, (D_IN, HIDDEN), dtype=jnp.float32) * 0.1
    b1 = jax.random.normal(k_b1, (1, HIDDEN), dtype=jnp.float32) * 0.01
    w2 = jax.random.normal(k_w2, (HIDDEN, D_IN), dtype=jnp.float32) * 0.1
    b2 = jax.random.normal(k_b2, (1, D_IN), dtype=jnp.float32) * 0.01
    gamma = jnp.ones((1, D_IN), dtype=jnp.float32)
    beta = jnp.zeros((1, D_IN), dtype=jnp.float32)
    params = (w1, b1, w2, b2, gamma, beta)

    out = jax.jit(gin_layer)(adj, h, snorm_n, params)
    out = jax.block_until_ready(out)

    ref = reference(adj, h, snorm_n, params, eps=0.0)
    assert out.shape == (N, D_IN)
    # bf16 aggregation matmul + bf16 (N,Dp) intermediate -> ~0.3% relative error.
    assert jnp.allclose(out, ref, atol=5e-2, rtol=2e-2), "mismatch vs reference"

    print("KERNEL_OK")
</pallas_src>

<mosaic_0001>
module attributes {stable_mosaic.version = 11 : i64} {
  func.func @_gin_mp_mlp_kernel(%arg0: i32, %arg1: memref<1xf32, #tpu.memory_space<smem>>, %arg2: memref<128x384xi8, #tpu.memory_space<vmem>>, %arg3: memref<384x128xbf16, #tpu.memory_space<vmem>>, %arg4: memref<128x128xf32, #tpu.memory_space<vmem>>, %arg5: memref<128x1xf32, #tpu.memory_space<vmem>>, %arg6: memref<128x128xf32, #tpu.memory_space<vmem>>, %arg7: memref<1x128xf32, #tpu.memory_space<vmem>>, %arg8: memref<128x128xf32, #tpu.memory_space<vmem>>, %arg9: memref<1x128xf32, #tpu.memory_space<vmem>>, %arg10: memref<128x128xbf16, #tpu.memory_space<vmem>>, %arg11: memref<8x128xf32, #tpu.memory_space<vmem>>) attributes {dimension_semantics = [#tpu.dimension_semantics<parallel>], iteration_bounds = array<i64: 3>, scalar_prefetch = 0 : i64, scratch_operands = 0 : i64, tpu.core_type = #tpu.core_type<tc>, window_params = [{transform_indices = @transform_0, window_bounds = array<i64: 1>}, {transform_indices = @transform_1, window_bounds = array<i64: 128, 384>}, {pipeline_mode = #tpu.pipeline_mode<synchronous>, transform_indices = @transform_2, window_bounds = array<i64: 384, 128>}, {transform_indices = @transform_3, window_bounds = array<i64: 128, 128>}, {transform_indices = @transform_4, window_bounds = array<i64: 128, 1>}, {pipeline_mode = #tpu.pipeline_mode<synchronous>, transform_indices = @transform_5, window_bounds = array<i64: 128, 128>}, {pipeline_mode = #tpu.pipeline_mode<synchronous>, transform_indices = @transform_6, window_bounds = array<i64: 1, 128>}, {pipeline_mode = #tpu.pipeline_mode<synchronous>, transform_indices = @transform_7, window_bounds = array<i64: 128, 128>}, {pipeline_mode = #tpu.pipeline_mode<synchronous>, transform_indices = @transform_8, window_bounds = array<i64: 1, 128>}, {transform_indices = @transform_9, window_bounds = array<i64: 128, 128>}, {transform_indices = @transform_10, window_bounds = array<i64: 8, 128>}]} {
    %c0 = arith.constant 0 : index
    %0 = memref.load %arg1[%c0] : memref<1xf32, #tpu.memory_space<smem>>
    %cst = arith.constant 1.000000e+00 : f32
    %1 = arith.addf %cst, %0 : f32
    %c0_0 = arith.constant 0 : index
    %c0_1 = arith.constant 0 : index
    %2 = vector.load %arg2[%c0_0, %c0_1] : memref<128x384xi8, #tpu.memory_space<vmem>>, vector<128x384xi8>
    %3 = arith.sitofp %2 : vector<128x384xi8> to vector<128x384xbf16>
    %c0_2 = arith.constant 0 : index
    %c0_3 = arith.constant 0 : index
    %4 = vector.load %arg3[%c0_2, %c0_3] : memref<384x128xbf16, #tpu.memory_space<vmem>>, vector<384x128xbf16>
    %cst_4 = arith.constant dense<0.000000e+00> : vector<128x128xf32>
    %5 = tpu.matmul %3, %4, %cst_4 {dimension_numbers = #tpu.dot_dimension_numbers<[1], [0], [0], [1], [0, 0, 1, 1], [], []>} : vector<128x384xbf16>, vector<384x128xbf16>, vector<128x128xf32> -> vector<128x128xf32>
    %c0_5 = arith.constant 0 : index
    %c0_6 = arith.constant 0 : index
    %6 = vector.load %arg4[%c0_5, %c0_6] : memref<128x128xf32, #tpu.memory_space<vmem>>, vector<128x128xf32>
    %7 = vector.broadcast %1 : f32 to vector<128x128xf32>
    %8 = arith.mulf %7, %6 : vector<128x128xf32>
    %9 = arith.addf %8, %5 : vector<128x128xf32>
    %c0_7 = arith.constant 0 : index
    %c0_8 = arith.constant 0 : index
    %10 = vector.load %arg6[%c0_7, %c0_8] : memref<128x128xf32, #tpu.memory_space<vmem>>, vector<128x128xf32>
    %cst_9 = arith.constant dense<0.000000e+00> : vector<128x128xf32>
    %11 = tpu.matmul %9, %10, %cst_9 {dimension_numbers = #tpu.dot_dimension_numbers<[1], [0], [0], [1], [0, 0, 1, 1], [], []>} : vector<128x128xf32>, vector<128x128xf32>, vector<128x128xf32> -> vector<128x128xf32>
    %c0_10 = arith.constant 0 : index
    %c0_11 = arith.constant 0 : index
    %12 = vector.load %arg7[%c0_10, %c0_11] : memref<1x128xf32, #tpu.memory_space<vmem>>, vector<1x128xf32>
    %13 = vector.broadcast %12 : vector<1x128xf32> to vector<128x128xf32>
    %14 = arith.addf %11, %13 : vector<128x128xf32>
    %cst_12 = arith.constant 0.000000e+00 : f32
    %15 = vector.broadcast %cst_12 : f32 to vector<128x128xf32>
    %16 = arith.maximumf %14, %15 : vector<128x128xf32>
    %c0_13 = arith.constant 0 : index
    %c0_14 = arith.constant 0 : index
    %17 = vector.load %arg8[%c0_13, %c0_14] : memref<128x128xf32, #tpu.memory_space<vmem>>, vector<128x128xf32>
    %cst_15 = arith.constant dense<0.000000e+00> : vector<128x128xf32>
    %18 = tpu.matmul %16, %17, %cst_15 {dimension_numbers = #tpu.dot_dimension_numbers<[1], [0], [0], [1], [0, 0, 1, 1], [], []>} : vector<128x128xf32>, vector<128x128xf32>, vector<128x128xf32> -> vector<128x128xf32>
    %c0_16 = arith.constant 0 : index
    %c0_17 = arith.constant 0 : index
    %19 = vector.load %arg9[%c0_16, %c0_17] : memref<1x128xf32, #tpu.memory_space<vmem>>, vector<1x128xf32>
    %20 = vector.broadcast %19 : vector<1x128xf32> to vector<128x128xf32>
    %21 = arith.addf %18, %20 : vector<128x128xf32>
    %c0_18 = arith.constant 0 : index
    %c0_19 = arith.constant 0 : index
    %22 = vector.load %arg5[%c0_18, %c0_19] : memref<128x1xf32, #tpu.memory_space<vmem>>, vector<128x1xf32>
    %23 = vector.broadcast %22 : vector<128x1xf32> to vector<128x128xf32>
    %24 = arith.mulf %21, %23 : vector<128x128xf32>
    %cst_20 = arith.constant dense<0.000000e+00> : vector<128xf32>
    %25 = vector.multi_reduction <add>, %24, %cst_20 [0] : vector<128x128xf32> to vector<128xf32>
    %26 = vector.shape_cast %25 : vector<128xf32> to vector<1x128xf32>
    %27 = arith.mulf %24, %24 : vector<128x128xf32>
    %cst_21 = arith.constant dense<0.000000e+00> : vector<128xf32>
    %28 = vector.multi_reduction <add>, %27, %cst_21 [0] : vector<128x128xf32> to vector<128xf32>
    %29 = vector.shape_cast %28 : vector<128xf32> to vector<1x128xf32>
    %30 = tpu.iota {dimensions = array<i32: 0>} : vector<8x128xi32>
    %c0_i32 = arith.constant 0 : i32
    %31 = vector.broadcast %c0_i32 : i32 to vector<8x128xi32>
    %32 = arith.cmpi eq, %30, %31 : vector<8x128xi32>
    %cst_22 = arith.constant 0.000000e+00 : f32
    %33 = vector.shape_cast %26 : vector<1x128xf32> to vector<1x128xf32>
    %34 = vector.broadcast %33 : vector<1x128xf32> to vector<8x128xf32>
    %35 = vector.broadcast %cst_22 : f32 to vector<8x128xf32>
    %36 = arith.select %32, %34, %35 : vector<8x128xi1>, vector<8x128xf32>
    %c1_i32 = arith.constant 1 : i32
    %37 = vector.broadcast %c1_i32 : i32 to vector<8x128xi32>
    %38 = arith.cmpi eq, %30, %37 : vector<8x128xi32>
    %cst_23 = arith.constant 0.000000e+00 : f32
    %39 = vector.shape_cast %29 : vector<1x128xf32> to vector<1x128xf32>
    %40 = vector.broadcast %39 : vector<1x128xf32> to vector<8x128xf32>
    %41 = vector.broadcast %cst_23 : f32 to vector<8x128xf32>
    %42 = arith.select %38, %40, %41 : vector<8x128xi1>, vector<8x128xf32>
    %43 = arith.addf %36, %42 : vector<8x128xf32>
    %c0_24 = arith.constant 0 : index
    %c0_25 = arith.constant 0 : index
    %44 = vector.load %arg11[%c0_24, %c0_25] : memref<8x128xf32, #tpu.memory_space<vmem>>, vector<8x128xf32>
    tpu.vector_store %arg11[%c0_24, %c0_25], %43 {strides = array<i32>} : memref<8x128xf32, #tpu.memory_space<vmem>>, vector<8x128xf32>,
    %45 = arith.truncf %24 : vector<128x128xf32> to vector<128x128xbf16>
    %c0_26 = arith.constant 0 : index
    %c0_27 = arith.constant 0 : index
    %46 = vector.load %arg10[%c0_26, %c0_27] : memref<128x128xbf16, #tpu.memory_space<vmem>>, vector<128x128xbf16>
    tpu.vector_store %arg10[%c0_26, %c0_27], %45 {strides = array<i32>} : memref<128x128xbf16, #tpu.memory_space<vmem>>, vector<128x128xbf16>,
    return
  }
  func.func @transform_0(%arg0: i32) -> i32 {
    %c0_i32 = arith.constant 0 : i32
    %c0_i32_0 = arith.constant 0 : i32
    return %c0_i32 : i32
  }
  func.func @transform_1(%arg0: i32) -> (i32, i32) {
    %c0_i32 = arith.constant 0 : i32
    %c0_i32_0 = arith.constant 0 : i32
    return %arg0, %c0_i32 : i32, i32
  }
  func.func @transform_2(%arg0: i32) -> (i32, i32) {
    %c0_i32 = arith.constant 0 : i32
    %c0_i32_0 = arith.constant 0 : i32
    %c0_i32_1 = arith.constant 0 : i32
    return %c0_i32, %c0_i32_0 : i32, i32
  }
  func.func @transform_3(%arg0: i32) -> (i32, i32) {
    %c0_i32 = arith.constant 0 : i32
    %c0_i32_0 = arith.constant 0 : i32
    return %arg0, %c0_i32 : i32, i32
  }
  func.func @transform_4(%arg0: i32) -> (i32, i32) {
    %c0_i32 = arith.constant 0 : i32
    %c0_i32_0 = arith.constant 0 : i32
    return %arg0, %c0_i32 : i32, i32
  }
  func.func @transform_5(%arg0: i32) -> (i32, i32) {
    %c0_i32 = arith.constant 0 : i32
    %c0_i32_0 = arith.constant 0 : i32
    %c0_i32_1 = arith.constant 0 : i32
    return %c0_i32, %c0_i32_0 : i32, i32
  }
  func.func @transform_6(%arg0: i32) -> (i32, i32) {
    %c0_i32 = arith.constant 0 : i32
    %c0_i32_0 = arith.constant 0 : i32
    %c0_i32_1 = arith.constant 0 : i32
    return %c0_i32, %c0_i32_0 : i32, i32
  }
  func.func @transform_7(%arg0: i32) -> (i32, i32) {
    %c0_i32 = arith.constant 0 : i32
    %c0_i32_0 = arith.constant 0 : i32
    %c0_i32_1 = arith.constant 0 : i32
    return %c0_i32, %c0_i32_0 : i32, i32
  }
  func.func @transform_8(%arg0: i32) -> (i32, i32) {
    %c0_i32 = arith.constant 0 : i32
    %c0_i32_0 = arith.constant 0 : i32
    %c0_i32_1 = arith.constant 0 : i32
    return %c0_i32, %c0_i32_0 : i32, i32
  }
  func.func @transform_9(%arg0: i32) -> (i32, i32) {
    %c0_i32 = arith.constant 0 : i32
    %c0_i32_0 = arith.constant 0 : i32
    return %arg0, %c0_i32 : i32, i32
  }
  func.func @transform_10(%arg0: i32) -> (i32, i32) {
    %c0_i32 = arith.constant 0 : i32
    %c0_i32_0 = arith.constant 0 : i32
    return %arg0, %c0_i32 : i32, i32
  }
}

module attributes {stable_mosaic.version = 11 : i64} {
  func.func @_gin_bn_relu_res_kernel(%arg0: i32, %arg1: memref<128x128xbf16, #tpu.memory_space<vmem>>, %arg2: memref<128x128xf32, #tpu.memory_space<vmem>>, %arg3: memref<1x128xf32, #tpu.memory_space<vmem>>, %arg4: memref<1x128xf32, #tpu.memory_space<vmem>>, %arg5: memref<128x128xf32, #tpu.memory_space<vmem>>) attributes {dimension_semantics = [#tpu.dimension_semantics<parallel>], iteration_bounds = array<i64: 3>, scalar_prefetch = 0 : i64, scratch_operands = 0 : i64, tpu.core_type = #tpu.core_type<tc>, window_params = [{transform_indices = @transform_0, window_bounds = array<i64: 128, 128>}, {transform_indices = @transform_1, window_bounds = array<i64: 128, 128>}, {pipeline_mode = #tpu.pipeline_mode<synchronous>, transform_indices = @transform_2, window_bounds = array<i64: 1, 128>}, {pipeline_mode = #tpu.pipeline_mode<synchronous>, transform_indices = @transform_3, window_bounds = array<i64: 1, 128>}, {transform_indices = @transform_4, window_bounds = array<i64: 128, 128>}]} {
    %c0 = arith.constant 0 : index
    %c0_0 = arith.constant 0 : index
    %0 = vector.load %arg1[%c0, %c0_0] : memref<128x128xbf16, #tpu.memory_space<vmem>>, vector<128x128xbf16>
    %1 = arith.extf %0 : vector<128x128xbf16> to vector<128x128xf32>
    %c0_1 = arith.constant 0 : index
    %c0_2 = arith.constant 0 : index
    %2 = vector.load %arg3[%c0_1, %c0_2] : memref<1x128xf32, #tpu.memory_space<vmem>>, vector<1x128xf32>
    %3 = vector.broadcast %2 : vector<1x128xf32> to vector<128x128xf32>
    %4 = arith.mulf %1, %3 : vector<128x128xf32>
    %c0_3 = arith.constant 0 : index
    %c0_4 = arith.constant 0 : index
    %5 = vector.load %arg4[%c0_3, %c0_4] : memref<1x128xf32, #tpu.memory_space<vmem>>, vector<1x128xf32>
    %6 = vector.broadcast %5 : vector<1x128xf32> to vector<128x128xf32>
    %7 = arith.addf %4, %6 : vector<128x128xf32>
    %cst = arith.constant 0.000000e+00 : f32
    %8 = vector.broadcast %cst : f32 to vector<128x128xf32>
    %9 = arith.maximumf %7, %8 : vector<128x128xf32>
    %c0_5 = arith.constant 0 : index
    %c0_6 = arith.constant 0 : index
    %10 = vector.load %arg2[%c0_5, %c0_6] : memref<128x128xf32, #tpu.memory_space<vmem>>, vector<128x128xf32>
    %11 = arith.addf %9, %10 : vector<128x128xf32>
    %c0_7 = arith.constant 0 : index
    %c0_8 = arith.constant 0 : index
    %12 = vector.load %arg5[%c0_7, %c0_8] : memref<128x128xf32, #tpu.memory_space<vmem>>, vector<128x128xf32>
    tpu.vector_store %arg5[%c0_7, %c0_8], %11 {strides = array<i32>} : memref<128x128xf32, #tpu.memory_space<vmem>>, vector<128x128xf32>,
    return
  }
  func.func @transform_0(%arg0: i32) -> (i32, i32) {
    %c0_i32 = arith.constant 0 : i32
    %c0_i32_0 = arith.constant 0 : i32
    return %arg0, %c0_i32 : i32, i32
  }
  func.func @transform_1(%arg0: i32) -> (i32, i32) {
    %c0_i32 = arith.constant 0 : i32
    %c0_i32_0 = arith.constant 0 : i32
    return %arg0, %c0_i32 : i32, i32
  }
  func.func @transform_2(%arg0: i32) -> (i32, i32) {
    %c0_i32 = arith.constant 0 : i32
    %c0_i32_0 = arith.constant 0 : i32
    %c0_i32_1 = arith.constant 0 : i32
    return %c0_i32, %c0_i32_0 : i32, i32
  }
  func.func @transform_3(%arg0: i32) -> (i32, i32) {
    %c0_i32 = arith.constant 0 : i32
    %c0_i32_0 = arith.constant 0 : i32
    %c0_i32_1 = arith.constant 0 : i32
    return %c0_i32, %c0_i32_0 : i32, i32
  }
  func.func @transform_4(%arg0: i32) -> (i32, i32) {
    %c0_i32 = arith.constant 0 : i32
    %c0_i32_0 = arith.constant 0 : i32
    return %arg0, %c0_i32 : i32, i32
  }
}

</mosaic_0001>

<llo_original>
// kernel: gin_layer.3
$region0: #{gin_layer.3}
  #allocation0 [shape = 'u32[]', space=smem, size = 0x4, offset = 0x4, fixed_abs, tag = 'smem constant byte address 0x4 - core index']
  #allocation1 [shape = 'u32[144,128]{1,0:T(1,128)}', space=vmem, size = 0x12000, scoped, tag = 'internal scratch']
  %s0 = inlined_call_operand.vmem [shape: bf16[384,128], index: 0, kind: input, shape index: {}]
  %s1 = inlined_call_operand.vmem [shape: f32[384,128], index: 1, kind: input, shape index: {}]
  %s2 = inlined_call_operand.vmem [shape: f32[1,128], index: 2, kind: input, shape index: {}]
  %s3 = inlined_call_operand.vmem [shape: f32[1,128], index: 3, kind: input, shape index: {}]
  %s4 = inlined_call_operand.vmem [shape: f32[384,128], index: 4, kind: output, shape index: {}]
  %s5 = sld [smem:[#allocation0]]
  $region49: #{gin_layer.3} parent=0
    _
  %s7 = ssub.s32 1, %s5
  %s8 = scalar_select 0, %s7, %s5
  loop: start=0, step=1, limit=5
  $region2: #{gin_layer.3} parent=0 // loop_pre_header
    _
  $region3: #{gin_layer.3} parent=0 // loop_header
    %s10 = sphi 0, %s14
    %p11 = scmp.ge.s32.totalorder %s10, 5
    %s20 = sphi 0, %s22
    %s23 = sphi 0, %s20
    %s24 = sphi 0, %s23
    %s40 = sphi 0, %s24
    %s46 = sphi 0, %s48
    %s49 = sphi 0, %s46
    %s50 = sphi 0, %s49
    %s66 = sphi 0, %s50
    %s70 = sphi 0, %s70
    %s72 = sphi 0, %s70
    %s73 = sphi 0, %s72
    %s87 = sphi 0, %s73
    %s91 = sphi 0, %s91
    %s93 = sphi 0, %s91
    %s94 = sphi 0, %s93
    %s108 = sphi 0, %s94
    %s114 = sphi 0, %s116
    %s117 = sphi 0, %s114
    %s118 = sphi 0, %s117
    %s134 = sphi 0, %s118
  $region4: #{gin_layer.3} parent=0 // loop_header_branch
    %13 = sbr.rel (%p11) target = $region8
  $region5: #{gin_layer.3} parent=0 // loop_body
    %s15 = ssub.s32 %s10, 1
    %s16 = ssub.s32 %s10, 2
    %s17 = sadd.s32 %s10, 1
    %s18 = ssub.s32 %s10, %s17
    %p19 = scmp.eq.s32.totalorder %s18, 0
    %s21 = sadd.s32 %s20, 1
    %s22 = scalar_select %p19, %s20, %s21
    %p25 = pneg %p19
    %p26 = scmp.eq.s32.totalorder %s10, 2
    %p27 = por %p25, %p26
    %p28 = scmp.ne.s32.totalorder %s20, %s23
    %p29 = scmp.eq.s32.totalorder %s10, 0
    %p30 = por %p28, %p29
    %p31 = scmp.ne.s32.totalorder %s20, %s23
    %p32 = scmp.eq.s32.totalorder %s15, 2
    %p33 = por %p31, %p32
    %p34 = scmp.ne.s32.totalorder %s23, %s24
    %p35 = scmp.eq.s32.totalorder %s15, 0
    %p36 = por %p34, %p35
    %p37 = scmp.ne.s32.totalorder %s23, %s24
    %p38 = scmp.eq.s32.totalorder %s16, 2
    %p39 = por %p37, %p38
    %p41 = scmp.ne.s32.totalorder %s24, %s40
    %p42 = scmp.eq.s32.totalorder %s16, 0
    %p43 = por %p41, %p42
    %s44 = ssub.s32 %s10, %s17
    %p45 = scmp.eq.s32.totalorder %s44, 0
    %s47 = sadd.s32 %s46, 1
    %s48 = scalar_select %p45, %s46, %s47
    %p51 = pneg %p45
    %p52 = scmp.eq.s32.totalorder %s10, 2
    %p53 = por %p51, %p52
    %p54 = scmp.ne.s32.totalorder %s46, %s49
    %p55 = scmp.eq.s32.totalorder %s10, 0
    %p56 = por %p54, %p55
    %p57 = scmp.ne.s32.totalorder %s46, %s49
    %p58 = scmp.eq.s32.totalorder %s15, 2
    %p59 = por %p57, %p58
    %p60 = scmp.ne.s32.totalorder %s49, %s50
    %p61 = scmp.eq.s32.totalorder %s15, 0
    %p62 = por %p60, %p61
    %p63 = scmp.ne.s32.totalorder %s49, %s50
    %p64 = scmp.eq.s32.totalorder %s16, 2
    %p65 = por %p63, %p64
    %p67 = scmp.ne.s32.totalorder %s50, %s66
    %p68 = scmp.eq.s32.totalorder %s16, 0
    %p69 = por %p67, %p68
    %s71 = sadd.s32 %s70, 1
    %p74 = scmp.eq.s32.totalorder %s10, 2
    %p75 = scmp.ne.s32.totalorder %s70, %s72
    %p76 = scmp.eq.s32.totalorder %s10, 0
    %p77 = por %p75, %p76
    %p78 = scmp.ne.s32.totalorder %s70, %s72
    %p79 = scmp.eq.s32.totalorder %s15, 2
    %p80 = por %p78, %p79
    %p81 = scmp.ne.s32.totalorder %s72, %s73
    %p82 = scmp.eq.s32.totalorder %s15, 0
    %p83 = por %p81, %p82
    %p84 = scmp.ne.s32.totalorder %s72, %s73
    %p85 = scmp.eq.s32.totalorder %s16, 2
    %p86 = por %p84, %p85
    %p88 = scmp.ne.s32.totalorder %s73, %s87
    %p89 = scmp.eq.s32.totalorder %s16, 0
    %p90 = por %p88, %p89
    %s92 = sadd.s32 %s91, 1
    %p95 = scmp.eq.s32.totalorder %s10, 2
    %p96 = scmp.ne.s32.totalorder %s91, %s93
    %p97 = scmp.eq.s32.totalorder %s10, 0
    %p98 = por %p96, %p97
    %p99 = scmp.ne.s32.totalorder %s91, %s93
    %p100 = scmp.eq.s32.totalorder %s15, 2
    %p101 = por %p99, %p100
    %p102 = scmp.ne.s32.totalorder %s93, %s94
    %p103 = scmp.eq.s32.totalorder %s15, 0
    %p104 = por %p102, %p103
    %p105 = scmp.ne.s32.totalorder %s93, %s94
    %p106 = scmp.eq.s32.totalorder %s16, 2
    %p107 = por %p105, %p106
    %p109 = scmp.ne.s32.totalorder %s94, %s108
    %p110 = scmp.eq.s32.totalorder %s16, 0
    %p111 = por %p109, %p110
    %s112 = ssub.s32 %s10, %s17
    %p113 = scmp.eq.s32.totalorder %s112, 0
    %s115 = sadd.s32 %s114, 1
    %s116 = scalar_select %p113, %s114, %s115
    %p119 = pneg %p113
    %p120 = scmp.eq.s32.totalorder %s10, 2
    %p121 = por %p119, %p120
    %p122 = scmp.ne.s32.totalorder %s114, %s117
    %p123 = scmp.eq.s32.totalorder %s10, 0
    %p124 = por %p122, %p123
    %p125 = scmp.ne.s32.totalorder %s114, %s117
    %p126 = scmp.eq.s32.totalorder %s15, 2
    %p127 = por %p125, %p126
    %p128 = scmp.ne.s32.totalorder %s117, %s118
    %p129 = scmp.eq.s32.totalorder %s15, 0
    %p130 = por %p128, %p129
    %p131 = scmp.ne.s32.totalorder %s117, %s118
    %p132 = scmp.eq.s32.totalorder %s16, 2
    %p133 = por %p131, %p132
    %p135 = scmp.ne.s32.totalorder %s118, %s134
    %p136 = scmp.eq.s32.totalorder %s16, 0
    %p137 = por %p135, %p136
    %p138 = scmp.le.s32.totalorder 1, %s10
    %p139 = scmp.lt.s32.totalorder %s10, 4
    %p140 = pnand %p138, %p139
    %p141 = pneg %p140
    // Predicated region
    $region9: #{gin_layer.3} parent=5 // pred_check
      _
    $region10: #{gin_layer.3} parent=5 // pred_check_branch
      %143 = sbr.rel (%p140) target = $region12
    $region11: #{gin_layer.3} parent=5 // pred_region
      %s144 = ssub.s32 %s10, 1
      // Predicated region
      $region13: #{gin_layer.3} parent=11 // pred_check
        %p145 = pneg %p83
      $region14: #{gin_layer.3} parent=11 // pred_check_branch
        %147 = sbr.rel (%p145) target = $region16
      $region15: #{gin_layer.3} parent=11 // pred_region
        _
      $region16: #{gin_layer.3} parent=11 // pred_fallthru
        _
      // Predicated region
      $region17: #{gin_layer.3} parent=11 // pred_check
        %p148 = pneg %p104
      $region18: #{gin_layer.3} parent=11 // pred_check_branch
        %150 = sbr.rel (%p148) target = $region20
      $region19: #{gin_layer.3} parent=11 // pred_region
        _
      $region20: #{gin_layer.3} parent=11 // pred_fallthru
        _
    $region12: #{gin_layer.3} parent=5 // pred_fallthru
      _
    %p151 = scmp.lt.s32.totalorder %s10, 3
    // Predicated region
    $region21: #{gin_layer.3} parent=5 // pred_check
      %p152 = pneg %p151
    $region22: #{gin_layer.3} parent=5 // pred_check_branch
      %154 = sbr.rel (%p152) target = $region24
    $region23: #{gin_layer.3} parent=5 // pred_region
      // Predicated region
      $region25: #{gin_layer.3} parent=23 // pred_check
        %p155 = pneg %p30
      $region26: #{gin_layer.3} parent=23 // pred_check_branch
        %157 = sbr.rel (%p155) target = $region28
      $region27: #{gin_layer.3} parent=23 // pred_region
        %s158 = smul.u32 16, %s10
        %p159 = scmp.lt.s32.totalorder %s158, 47
        %s160 = scalar_select %p159, %s158, 47
        %s161 = smul.addr %s160, 4
        %s162 = scalar_lea.vmem %s0, %s161
        %s163 = smul.u32 16, %s10
      $region28: #{gin_layer.3} parent=23 // pred_fallthru
        _
      // Predicated region
      $region29: #{gin_layer.3} parent=23 // pred_check
        %p164 = pneg %p56
      $region30: #{gin_layer.3} parent=23 // pred_check_branch
        %166 = sbr.rel (%p164) target = $region32
      $region31: #{gin_layer.3} parent=23 // pred_region
        %s167 = smul.u32 16, %s10
        %p168 = scmp.lt.s32.totalorder %s167, 47
        %s169 = scalar_select %p168, %s167, 47
        %s170 = smul.addr %s169, 8
        %s171 = scalar_lea.vmem %s1, %s170
        %s172 = smul.u32 16, %s10
      $region32: #{gin_layer.3} parent=23 // pred_fallthru
        _
    $region24: #{gin_layer.3} parent=5 // pred_fallthru
      _
    %p173 = scmp.le.s32.totalorder 1, %s10
    %p174 = scmp.lt.s32.totalorder %s10, 4
    %p175 = pnand %p173, %p174
    %p176 = pneg %p175
    // Predicated region
    $region33: #{gin_layer.3} parent=5 // pred_check
      _
    $region34: #{gin_layer.3} parent=5 // pred_check_branch
      %178 = sbr.rel (%p175) target = $region36
    $region35: #{gin_layer.3} parent=5 // pred_region
      %s179 = ssub.s32 %s10, 1
      %s180 = smul.u32 16, %s15
      %p181 = scmp.lt.s32.totalorder %s180, 47
      %s182 = scalar_select %p181, %s180, 47
      %s183 = smul.addr %s182, 4
      %s184 = scalar_lea.vmem %s0, %s183
      %p185 = pneg %p36
      %p186 = pneg %p33
      %s187 = smul.u32 16, %s15
      %p188 = scmp.lt.s32.totalorder %s187, 47
      %s189 = scalar_select %p188, %s187, 47
      %s190 = smul.addr %s189, 8
      %s191 = scalar_lea.vmem %s1, %s190
      %p192 = pneg %p62
      %p193 = pneg %p59
      %p194 = pneg %p83
      %p195 = pneg %p80
      %p196 = pneg %p104
      %p197 = pneg %p101
      %p198 = pneg %p130
      %p199 = pneg %p127
      %s200 = smul.u32 16, %s15
      %p201 = scmp.lt.s32.totalorder %s200, 47
      %s202 = scalar_select %p201, %s200, 47
      %s203 = smul.addr %s202, 8
      %s204 = scalar_lea.vmem %s4, %s203
      %s205 = smul.u32 16, %s15
      %p206 = scmp.lt.s32.totalorder %s205, 47
      %s207 = scalar_select %p206, %s205, 47
      %s208 = smul.addr %s207, 4
      %s209 = scalar_lea.vmem %s0, %s208
      %s210 = smul.u32 16, %s15
      %s211 = smul.u32 16, %s15
      %p212 = scmp.lt.s32.totalorder %s211, 47
      %s213 = scalar_select %p212, %s211, 47
      %s214 = smul.addr %s213, 8
      %s215 = scalar_lea.vmem %s1, %s214
      %s216 = smul.u32 16, %s15
      %s217 = smul.u32 16, %s15
      %p218 = scmp.lt.s32.totalorder %s217, 47
      %s219 = scalar_select %p218, %s217, 47
      %s220 = smul.addr %s219, 8
      %s221 = scalar_lea.vmem %s4, %s220
      %s222 = smul.u32 16, %s15
      %v223 = vld [vmem:[%s209] sm:$0xf]
      %v224 = vld [vmem:[%s209 + $0x4] sm:$0xf]
      %v225 = vld [vmem:[%s209 + $0x8] sm:$0xf]
      %v226 = vld [vmem:[%s209 + $0xc] sm:$0xf]
      %v227 = vld [vmem:[%s209 + $0x10] sm:$0xf]
      %v228 = vld [vmem:[%s209 + $0x14] sm:$0xf]
      %v229 = vld [vmem:[%s209 + $0x18] sm:$0xf]
      %v230 = vld [vmem:[%s209 + $0x1c] sm:$0xf]
      %v231 = vld [vmem:[%s209 + $0x20] sm:$0xf]
      %v232 = vld [vmem:[%s209 + $0x24] sm:$0xf]
      %v233 = vld [vmem:[%s209 + $0x28] sm:$0xf]
      %v234 = vld [vmem:[%s209 + $0x2c] sm:$0xf]
      %v235 = vld [vmem:[%s209 + $0x30] sm:$0xf]
      %v236 = vld [vmem:[%s209 + $0x34] sm:$0xf]
      %v237 = vld [vmem:[%s209 + $0x38] sm:$0xf]
      %v238 = vld [vmem:[%s209 + $0x3c] sm:$0xf]
      %v239 = vunpack.c.l.bf16 %v223
      %v240 = vunpack.c.l.bf16 %v224
      %v241 = vunpack.c.l.bf16 %v225
      %v242 = vunpack.c.l.bf16 %v226
      %v243 = vunpack.c.l.bf16 %v227
      %v244 = vunpack.c.l.bf16 %v228
      %v245 = vunpack.c.l.bf16 %v229
      %v246 = vunpack.c.l.bf16 %v230
      %v247 = vunpack.c.l.bf16 %v231
      %v248 = vunpack.c.l.bf16 %v232
      %v249 = vunpack.c.l.bf16 %v233
      %v250 = vunpack.c.l.bf16 %v234
      %v251 = vunpack.c.l.bf16 %v235
      %v252 = vunpack.c.l.bf16 %v236
      %v253 = vunpack.c.l.bf16 %v237
      %v254 = vunpack.c.l.bf16 %v238
      %v255 = vld [vmem:[%s2] sm:$0x1]
      %v257 = vlaneseq
      %v258 = vshrl.u32 %v257, 7
      %v259 = vsub.s32 0, %v258
      %v260 = vrot.slane %v255, %v259
      %v262 = vmul.f32 %v239, %v260
      %v263 = vmul.f32 %v240, %v260
      %v264 = vmul.f32 %v241, %v260
      %v265 = vmul.f32 %v242, %v260
      %v266 = vmul.f32 %v243, %v260
      %v267 = vmul.f32 %v244, %v260
      %v268 = vmul.f32 %v245, %v260
      %v269 = vmul.f32 %v246, %v260
      %v270 = vmul.f32 %v247, %v260
      %v271 = vmul.f32 %v248, %v260
      %v272 = vmul.f32 %v249, %v260
      %v273 = vmul.f32 %v250, %v260
      %v274 = vmul.f32 %v251, %v260
      %v275 = vmul.f32 %v252, %v260
      %v276 = vmul.f32 %v253, %v260
      %v277 = vmul.f32 %v254, %v260
      %v278 = vld [vmem:[%s3] sm:$0x1]
      %v280 = vlaneseq
      %v281 = vshrl.u32 %v280, 7
      %v282 = vsub.s32 0, %v281
      %v283 = vrot.slane %v278, %v282
      %v285 = vadd.f32 %v262, %v283
      %v286 = vadd.f32 %v263, %v283
      %v287 = vadd.f32 %v264, %v283
      %v288 = vadd.f32 %v265, %v283
      %v289 = vadd.f32 %v266, %v283
      %v290 = vadd.f32 %v267, %v283
      %v291 = vadd.f32 %v268, %v283
      %v292 = vadd.f32 %v269, %v283
      %v293 = vadd.f32 %v270, %v283
      %v294 = vadd.f32 %v271, %v283
      %v295 = vadd.f32 %v272, %v283
      %v296 = vadd.f32 %v273, %v283
      %v297 = vadd.f32 %v274, %v283
      %v298 = vadd.f32 %v275, %v283
      %v299 = vadd.f32 %v276, %v283
      %v300 = vadd.f32 %v277, %v283
      %v301 = vmax.f32 %v285, 0.0
      %v302 = vmax.f32 %v286, 0.0
      %v303 = vmax.f32 %v287, 0.0
      %v304 = vmax.f32 %v288, 0.0
      %v305 = vmax.f32 %v289, 0.0
      %v306 = vmax.f32 %v290, 0.0
      %v307 = vmax.f32 %v291, 0.0
      %v308 = vmax.f32 %v292, 0.0
      %v309 = vmax.f32 %v293, 0.0
      %v310 = vmax.f32 %v294, 0.0
      %v311 = vmax.f32 %v295, 0.0
      %v312 = vmax.f32 %v296, 0.0
      %v313 = vmax.f32 %v297, 0.0
      %v314 = vmax.f32 %v298, 0.0
      %v315 = vmax.f32 %v299, 0.0
      %v316 = vmax.f32 %v300, 0.0
      %v317 = vld [vmem:[%s215] sm:$0xff]
      %v318 = vld [vmem:[%s215 + $0x8] sm:$0xff]
      %v319 = vld [vmem:[%s215 + $0x10] sm:$0xff]
      %v320 = vld [vmem:[%s215 + $0x18] sm:$0xff]
      %v321 = vld [vmem:[%s215 + $0x20] sm:$0xff]
      %v322 = vld [vmem:[%s215 + $0x28] sm:$0xff]
      %v323 = vld [vmem:[%s215 + $0x30] sm:$0xff]
      %v324 = vld [vmem:[%s215 + $0x38] sm:$0xff]
      %v325 = vld [vmem:[%s215 + $0x40] sm:$0xff]
      %v326 = vld [vmem:[%s215 + $0x48] sm:$0xff]
      %v327 = vld [vmem:[%s215 + $0x50] sm:$0xff]
      %v328 = vld [vmem:[%s215 + $0x58] sm:$0xff]
      %v329 = vld [vmem:[%s215 + $0x60] sm:$0xff]
      %v330 = vld [vmem:[%s215 + $0x68] sm:$0xff]
      %v331 = vld [vmem:[%s215 + $0x70] sm:$0xff]
      %v332 = vld [vmem:[%s215 + $0x78] sm:$0xff]
      %v333 = vadd.f32 %v301, %v317
      %v334 = vadd.f32 %v302, %v318
      %v335 = vadd.f32 %v303, %v319
      %v336 = vadd.f32 %v304, %v320
      %v337 = vadd.f32 %v305, %v321
      %v338 = vadd.f32 %v306, %v322
      %v339 = vadd.f32 %v307, %v323
      %v340 = vadd.f32 %v308, %v324
      %v341 = vadd.f32 %v309, %v325
      %v342 = vadd.f32 %v310, %v326
      %v343 = vadd.f32 %v311, %v327
      %v344 = vadd.f32 %v312, %v328
      %v345 = vadd.f32 %v313, %v329
      %v346 = vadd.f32 %v314, %v330
      %v347 = vadd.f32 %v315, %v331
      %v348 = vadd.f32 %v316, %v332
      %349 = vst [vmem:[%s221] sm:$0xff] %v333
      %350 = vst [vmem:[%s221 + $0x8] sm:$0xff] %v334
      %351 = vst [vmem:[%s221 + $0x10] sm:$0xff] %v335
      %352 = vst [vmem:[%s221 + $0x18] sm:$0xff] %v336
      %353 = vst [vmem:[%s221 + $0x20] sm:$0xff] %v337
      %354 = vst [vmem:[%s221 + $0x28] sm:$0xff] %v338
      %355 = vst [vmem:[%s221 + $0x30] sm:$0xff] %v339
      %356 = vst [vmem:[%s221 + $0x38] sm:$0xff] %v340
      %357 = vst [vmem:[%s221 + $0x40] sm:$0xff] %v341
      %358 = vst [vmem:[%s221 + $0x48] sm:$0xff] %v342
      %359 = vst [vmem:[%s221 + $0x50] sm:$0xff] %v343
      %360 = vst [vmem:[%s221 + $0x58] sm:$0xff] %v344
      %361 = vst [vmem:[%s221 + $0x60] sm:$0xff] %v345
      %362 = vst [vmem:[%s221 + $0x68] sm:$0xff] %v346
      %363 = vst [vmem:[%s221 + $0x70] sm:$0xff] %v347
      %364 = vst [vmem:[%s221 + $0x78] sm:$0xff] %v348
      %s365 = smul.u32 16, %s15
      %p366 = scmp.lt.s32.totalorder %s365, 47
      %s367 = scalar_select %p366, %s365, 47
      %s368 = smul.addr %s367, 8
      %s369 = scalar_lea.vmem %s4, %s368
      // Predicated region
      $region37: #{gin_layer.3} parent=35 // pred_check
        %p370 = pneg %p127
      $region38: #{gin_layer.3} parent=35 // pred_check_branch
        %372 = sbr.rel (%p370) target = $region40
      $region39: #{gin_layer.3} parent=35 // pred_region
        %s373 = smul.u32 16, %s15
      $region40: #{gin_layer.3} parent=35 // pred_fallthru
        _
    $region36: #{gin_layer.3} parent=5 // pred_fallthru
      _
    %p374 = scmp.le.s32.totalorder 2, %s10
    // Predicated region
    $region41: #{gin_layer.3} parent=5 // pred_check
      %p375 = pneg %p374
    $region42: #{gin_layer.3} parent=5 // pred_check_branch
      %377 = sbr.rel (%p375) target = $region44
    $region43: #{gin_layer.3} parent=5 // pred_region
      %s378 = ssub.s32 %s10, 2
      // Predicated region
      $region45: #{gin_layer.3} parent=43 // pred_check
        %p379 = pneg %p133
      $region46: #{gin_layer.3} parent=43 // pred_check_branch
        %381 = sbr.rel (%p379) target = $region48
      $region47: #{gin_layer.3} parent=43 // pred_region
        %s382 = smul.u32 16, %s16
        %p383 = scmp.lt.s32.totalorder %s382, 47
        %s384 = scalar_select %p383, %s382, 47
        %s385 = smul.addr %s384, 8
        %s386 = scalar_lea.vmem %s4, %s385
      $region48: #{gin_layer.3} parent=43 // pred_fallthru
        _
    $region44: #{gin_layer.3} parent=5 // pred_fallthru
      _
  $region6: #{gin_layer.3} parent=0 // loop_footer
    %s14 = sadd.s32 1, %s10
  $region7: #{gin_layer.3} parent=0 // loop_footer_branch
    %9 = sbr.rel target = $region3
  $region8: #{gin_layer.3} parent=0 // loop_exit
    _

// kernel: gin_layer.2
$region0: #{gin_layer.2}
  #allocation0 [shape = 'u32[]', space=smem, size = 0x4, offset = 0x4, fixed_abs, tag = 'smem constant byte address 0x4 - core index']
  #allocation1 [shape = 'u32[144,128]{1,0:T(1,128)}', space=vmem, size = 0x12000, scoped, tag = 'internal scratch']
  #allocation2 [shape = 'f32[1]{0:T(128)S(6)}', space=smem, size = 0x200, scoped, tag = 'scoped memory for gin_layer.2']
  %s0 = inlined_call_operand.<no memory space> [shape: f32[1], index: 0, kind: input, shape index: {}]
  %s1 = inlined_call_operand.vmem [shape: s8[384,384], index: 1, kind: input, shape index: {}]
  %s2 = inlined_call_operand.vmem [shape: bf16[384,128], index: 2, kind: input, shape index: {}]
  %s3 = inlined_call_operand.vmem [shape: f32[384,128], index: 3, kind: input, shape index: {}]
  %s4 = inlined_call_operand.vmem [shape: f32[384,1], index: 4, kind: input, shape index: {}]
  %s5 = inlined_call_operand.vmem [shape: f32[128,128], index: 5, kind: input, shape index: {}]
  %s6 = inlined_call_operand.vmem [shape: f32[1,128], index: 6, kind: input, shape index: {}]
  %s7 = inlined_call_operand.vmem [shape: f32[128,128], index: 7, kind: input, shape index: {}]
  %s8 = inlined_call_operand.vmem [shape: f32[1,128], index: 8, kind: input, shape index: {}]
  %s9 = inlined_call_operand.vmem [shape: bf16[384,128], index: 9, kind: output, shape index: {0}]
  %s10 = inlined_call_operand.vmem [shape: f32[24,128], index: 10, kind: output, shape index: {1}]
  %11 = xla_tuple %s9, %s10
  %s12 = sld [smem:[#allocation0]]
  $region77: #{gin_layer.2} parent=0
    _
  %s14 = ssub.s32 1, %s12
  %s15 = scalar_select 0, %s14, %s12
  %16 = sst [smem:[#allocation2]] %s0
  loop: start=0, step=1, limit=5
  $region2: #{gin_layer.2} parent=0 // loop_pre_header
    _
  $region3: #{gin_layer.2} parent=0 // loop_header
    %s18 = sphi 0, %s22
    %p19 = scmp.ge.s32.totalorder %s18, 5
    %s26 = sphi 0, %s26
    %s28 = sphi 0, %s26
    %s29 = sphi 0, %s28
    %s43 = sphi 0, %s29
    %s49 = sphi 0, %s51
    %s52 = sphi 0, %s49
    %s53 = sphi 0, %s52
    %s69 = sphi 0, %s53
    %s73 = sphi 0, %s73
    %s75 = sphi 0, %s73
    %s76 = sphi 0, %s75
    %s90 = sphi 0, %s76
    %s96 = sphi 0, %s98
    %s99 = sphi 0, %s96
    %s100 = sphi 0, %s99
    %s116 = sphi 0, %s100
    %s122 = sphi 0, %s124
    %s125 = sphi 0, %s122
    %s126 = sphi 0, %s125
    %s142 = sphi 0, %s126
    %s146 = sphi 0, %s146
    %s148 = sphi 0, %s146
    %s149 = sphi 0, %s148
    %s163 = sphi 0, %s149
    %s167 = sphi 0, %s167
    %s169 = sphi 0, %s167
    %s170 = sphi 0, %s169
    %s184 = sphi 0, %s170
    %s188 = sphi 0, %s188
    %s190 = sphi 0, %s188
    %s191 = sphi 0, %s190
    %s205 = sphi 0, %s191
    %s209 = sphi 0, %s209
    %s211 = sphi 0, %s209
    %s212 = sphi 0, %s211
    %s226 = sphi 0, %s212
    %s232 = sphi 0, %s234
    %s235 = sphi 0, %s232
    %s236 = sphi 0, %s235
    %s252 = sphi 0, %s236
    %s258 = sphi 0, %s260
    %s261 = sphi 0, %s258
    %s262 = sphi 0, %s261
    %s278 = sphi 0, %s262
  $region4: #{gin_layer.2} parent=0 // loop_header_branch
    %21 = sbr.rel (%p19) target = $region8
  $region5: #{gin_layer.2} parent=0 // loop_body
    %s23 = ssub.s32 %s18, 1
    %s24 = ssub.s32 %s18, 2
    %s25 = sadd.s32 %s18, 1
    %s27 = sadd.s32 %s26, 1
    %p30 = scmp.eq.s32.totalorder %s18, 2
    %p31 = scmp.ne.s32.totalorder %s26, %s28
    %p32 = scmp.eq.s32.totalorder %s18, 0
    %p33 = por %p31, %p32
    %p34 = scmp.ne.s32.totalorder %s26, %s28
    %p35 = scmp.eq.s32.totalorder %s23, 2
    %p36 = por %p34, %p35
    %p37 = scmp.ne.s32.totalorder %s28, %s29
    %p38 = scmp.eq.s32.totalorder %s23, 0
    %p39 = por %p37, %p38
    %p40 = scmp.ne.s32.totalorder %s28, %s29
    %p41 = scmp.eq.s32.totalorder %s24, 2
    %p42 = por %p40, %p41
    %p44 = scmp.ne.s32.totalorder %s29, %s43
    %p45 = scmp.eq.s32.totalorder %s24, 0
    %p46 = por %p44, %p45
    %s47 = ssub.s32 %s18, %s25
    %p48 = scmp.eq.s32.totalorder %s47, 0
    %s50 = sadd.s32 %s49, 1
    %s51 = scalar_select %p48, %s49, %s50
    %p54 = pneg %p48
    %p55 = scmp.eq.s32.totalorder %s18, 2
    %p56 = por %p54, %p55
    %p57 = scmp.ne.s32.totalorder %s49, %s52
    %p58 = scmp.eq.s32.totalorder %s18, 0
    %p59 = por %p57, %p58
    %p60 = scmp.ne.s32.totalorder %s49, %s52
    %p61 = scmp.eq.s32.totalorder %s23, 2
    %p62 = por %p60, %p61
    %p63 = scmp.ne.s32.totalorder %s52, %s53
    %p64 = scmp.eq.s32.totalorder %s23, 0
    %p65 = por %p63, %p64
    %p66 = scmp.ne.s32.totalorder %s52, %s53
    %p67 = scmp.eq.s32.totalorder %s24, 2
    %p68 = por %p66, %p67
    %p70 = scmp.ne.s32.totalorder %s53, %s69
    %p71 = scmp.eq.s32.totalorder %s24, 0
    %p72 = por %p70, %p71
    %s74 = sadd.s32 %s73, 1
    %p77 = scmp.eq.s32.totalorder %s18, 2
    %p78 = scmp.ne.s32.totalorder %s73, %s75
    %p79 = scmp.eq.s32.totalorder %s18, 0
    %p80 = por %p78, %p79
    %p81 = scmp.ne.s32.totalorder %s73, %s75
    %p82 = scmp.eq.s32.totalorder %s23, 2
    %p83 = por %p81, %p82
    %p84 = scmp.ne.s32.totalorder %s75, %s76
    %p85 = scmp.eq.s32.totalorder %s23, 0
    %p86 = por %p84, %p85
    %p87 = scmp.ne.s32.totalorder %s75, %s76
    %p88 = scmp.eq.s32.totalorder %s24, 2
    %p89 = por %p87, %p88
    %p91 = scmp.ne.s32.totalorder %s76, %s90
    %p92 = scmp.eq.s32.totalorder %s24, 0
    %p93 = por %p91, %p92
    %s94 = ssub.s32 %s18, %s25
    %p95 = scmp.eq.s32.totalorder %s94, 0
    %s97 = sadd.s32 %s96, 1
    %s98 = scalar_select %p95, %s96, %s97
    %p101 = pneg %p95
    %p102 = scmp.eq.s32.totalorder %s18, 2
    %p103 = por %p101, %p102
    %p104 = scmp.ne.s32.totalorder %s96, %s99
    %p105 = scmp.eq.s32.totalorder %s18, 0
    %p106 = por %p104, %p105
    %p107 = scmp.ne.s32.totalorder %s96, %s99
    %p108 = scmp.eq.s32.totalorder %s23, 2
    %p109 = por %p107, %p108
    %p110 = scmp.ne.s32.totalorder %s99, %s100
    %p111 = scmp.eq.s32.totalorder %s23, 0
    %p112 = por %p110, %p111
    %p113 = scmp.ne.s32.totalorder %s99, %s100
    %p114 = scmp.eq.s32.totalorder %s24, 2
    %p115 = por %p113, %p114
    %p117 = scmp.ne.s32.totalorder %s100, %s116
    %p118 = scmp.eq.s32.totalorder %s24, 0
    %p119 = por %p117, %p118
    %s120 = ssub.s32 %s18, %s25
    %p121 = scmp.eq.s32.totalorder %s120, 0
    %s123 = sadd.s32 %s122, 1
    %s124 = scalar_select %p121, %s122, %s123
    %p127 = pneg %p121
    %p128 = scmp.eq.s32.totalorder %s18, 2
    %p129 = por %p127, %p128
    %p130 = scmp.ne.s32.totalorder %s122, %s125
    %p131 = scmp.eq.s32.totalorder %s18, 0
    %p132 = por %p130, %p131
    %p133 = scmp.ne.s32.totalorder %s122, %s125
    %p134 = scmp.eq.s32.totalorder %s23, 2
    %p135 = por %p133, %p134
    %p136 = scmp.ne.s32.totalorder %s125, %s126
    %p137 = scmp.eq.s32.totalorder %s23, 0
    %p138 = por %p136, %p137
    %p139 = scmp.ne.s32.totalorder %s125, %s126
    %p140 = scmp.eq.s32.totalorder %s24, 2
    %p141 = por %p139, %p140
    %p143 = scmp.ne.s32.totalorder %s126, %s142
    %p144 = scmp.eq.s32.totalorder %s24, 0
    %p145 = por %p143, %p144
    %s147 = sadd.s32 %s146, 1
    %p150 = scmp.eq.s32.totalorder %s18, 2
    %p151 = scmp.ne.s32.totalorder %s146, %s148
    %p152 = scmp.eq.s32.totalorder %s18, 0
    %p153 = por %p151, %p152
    %p154 = scmp.ne.s32.totalorder %s146, %s148
    %p155 = scmp.eq.s32.totalorder %s23, 2
    %p156 = por %p154, %p155
    %p157 = scmp.ne.s32.totalorder %s148, %s149
    %p158 = scmp.eq.s32.totalorder %s23, 0
    %p159 = por %p157, %p158
    %p160 = scmp.ne.s32.totalorder %s148, %s149
    %p161 = scmp.eq.s32.totalorder %s24, 2
    %p162 = por %p160, %p161
    %p164 = scmp.ne.s32.totalorder %s149, %s163
    %p165 = scmp.eq.s32.totalorder %s24, 0
    %p166 = por %p164, %p165
    %s168 = sadd.s32 %s167, 1
    %p171 = scmp.eq.s32.totalorder %s18, 2
    %p172 = scmp.ne.s32.totalorder %s167, %s169
    %p173 = scmp.eq.s32.totalorder %s18, 0
    %p174 = por %p172, %p173
    %p175 = scmp.ne.s32.totalorder %s167, %s169
    %p176 = scmp.eq.s32.totalorder %s23, 2
    %p177 = por %p175, %p176
    %p178 = scmp.ne.s32.totalorder %s169, %s170
    %p179 = scmp.eq.s32.totalorder %s23, 0
    %p180 = por %p178, %p179
    %p181 = scmp.ne.s32.totalorder %s169, %s170
    %p182 = scmp.eq.s32.totalorder %s24, 2
    %p183 = por %p181, %p182
    %p185 = scmp.ne.s32.totalorder %s170, %s184
    %p186 = scmp.eq.s32.totalorder %s24, 0
    %p187 = por %p185, %p186
    %s189 = sadd.s32 %s188, 1
    %p192 = scmp.eq.s32.totalorder %s18, 2
    %p193 = scmp.ne.s32.totalorder %s188, %s190
    %p194 = scmp.eq.s32.totalorder %s18, 0
    %p195 = por %p193, %p194
    %p196 = scmp.ne.s32.totalorder %s188, %s190
    %p197 = scmp.eq.s32.totalorder %s23, 2
    %p198 = por %p196, %p197
    %p199 = scmp.ne.s32.totalorder %s190, %s191
    %p200 = scmp.eq.s32.totalorder %s23, 0
    %p201 = por %p199, %p200
    %p202 = scmp.ne.s32.totalorder %s190, %s191
    %p203 = scmp.eq.s32.totalorder %s24, 2
    %p204 = por %p202, %p203
    %p206 = scmp.ne.s32.totalorder %s191, %s205
    %p207 = scmp.eq.s32.totalorder %s24, 0
    %p208 = por %p206, %p207
    %s210 = sadd.s32 %s209, 1
    %p213 = scmp.eq.s32.totalorder %s18, 2
    %p214 = scmp.ne.s32.totalorder %s209, %s211
    %p215 = scmp.eq.s32.totalorder %s18, 0
    %p216 = por %p214, %p215
    %p217 = scmp.ne.s32.totalorder %s209, %s211
    %p218 = scmp.eq.s32.totalorder %s23, 2
    %p219 = por %p217, %p218
    %p220 = scmp.ne.s32.totalorder %s211, %s212
    %p221 = scmp.eq.s32.totalorder %s23, 0
    %p222 = por %p220, %p221
    %p223 = scmp.ne.s32.totalorder %s211, %s212
    %p224 = scmp.eq.s32.totalorder %s24, 2
    %p225 = por %p223, %p224
    %p227 = scmp.ne.s32.totalorder %s212, %s226
    %p228 = scmp.eq.s32.totalorder %s24, 0
    %p229 = por %p227, %p228
    %s230 = ssub.s32 %s18, %s25
    %p231 = scmp.eq.s32.totalorder %s230, 0
    %s233 = sadd.s32 %s232, 1
    %s234 = scalar_select %p231, %s232, %s233
    %p237 = pneg %p231
    %p238 = scmp.eq.s32.totalorder %s18, 2
    %p239 = por %p237, %p238
    %p240 = scmp.ne.s32.totalorder %s232, %s235
    %p241 = scmp.eq.s32.totalorder %s18, 0
    %p242 = por %p240, %p241
    %p243 = scmp.ne.s32.totalorder %s232, %s235
    %p244 = scmp.eq.s32.totalorder %s23, 2
    %p245 = por %p243, %p244
    %p246 = scmp.ne.s32.totalorder %s235, %s236
    %p247 = scmp.eq.s32.totalorder %s23, 0
    %p248 = por %p246, %p247
    %p249 = scmp.ne.s32.totalorder %s235, %s236
    %p250 = scmp.eq.s32.totalorder %s24, 2
    %p251 = por %p249, %p250
    %p253 = scmp.ne.s32.totalorder %s236, %s252
    %p254 = scmp.eq.s32.totalorder %s24, 0
    %p255 = por %p253, %p254
    %s256 = ssub.s32 %s18, %s25
    %p257 = scmp.eq.s32.totalorder %s256, 0
    %s259 = sadd.s32 %s258, 1
    %s260 = scalar_select %p257, %s258, %s259
    %p263 = pneg %p257
    %p264 = scmp.eq.s32.totalorder %s18, 2
    %p265 = por %p263, %p264
    %p266 = scmp.ne.s32.totalorder %s258, %s261
    %p267 = scmp.eq.s32.totalorder %s18, 0
    %p268 = por %p266, %p267
    %p269 = scmp.ne.s32.totalorder %s258, %s261
    %p270 = scmp.eq.s32.totalorder %s23, 2
    %p271 = por %p269, %p270
    %p272 = scmp.ne.s32.totalorder %s261, %s262
    %p273 = scmp.eq.s32.totalorder %s23, 0
    %p274 = por %p272, %p273
    %p275 = scmp.ne.s32.totalorder %s261, %s262
    %p276 = scmp.eq.s32.totalorder %s24, 2
    %p277 = por %p275, %p276
    %p279 = scmp.ne.s32.totalorder %s262, %s278
    %p280 = scmp.eq.s32.totalorder %s24, 0
    %p281 = por %p279, %p280
    %p282 = scmp.le.s32.totalorder 1, %s18
    %p283 = scmp.lt.s32.totalorder %s18, 4
    %p284 = pnand %p282, %p283
    %p285 = pneg %p284
    // Predicated region
    $region9: #{gin_layer.2} parent=5 // pred_check
      _
    $region10: #{gin_layer.2} parent=5 // pred_check_branch
      %287 = sbr.rel (%p284) target = $region12
    $region11: #{gin_layer.2} parent=5 // pred_region
      %s288 = ssub.s32 %s18, 1
      // Predicated region
      $region13: #{gin_layer.2} parent=11 // pred_check
        %p289 = pneg %p39
      $region14: #{gin_layer.2} parent=11 // pred_check_branch
        %291 = sbr.rel (%p289) target = $region16
      $region15: #{gin_layer.2} parent=11 // pred_region
        _
      $region16: #{gin_layer.2} parent=11 // pred_fallthru
        _
      // Predicated region
      $region17: #{gin_layer.2} parent=11 // pred_check
        %p292 = pneg %p86
      $region18: #{gin_layer.2} parent=11 // pred_check_branch
        %294 = sbr.rel (%p292) target = $region20
      $region19: #{gin_layer.2} parent=11 // pred_region
        _
      $region20: #{gin_layer.2} parent=11 // pred_fallthru
        _
      // Predicated region
      $region21: #{gin_layer.2} parent=11 // pred_check
        %p295 = pneg %p159
      $region22: #{gin_layer.2} parent=11 // pred_check_branch
        %297 = sbr.rel (%p295) target = $region24
      $region23: #{gin_layer.2} parent=11 // pred_region
        _
      $region24: #{gin_layer.2} parent=11 // pred_fallthru
        _
      // Predicated region
      $region25: #{gin_layer.2} parent=11 // pred_check
        %p298 = pneg %p180
      $region26: #{gin_layer.2} parent=11 // pred_check_branch
        %300 = sbr.rel (%p298) target = $region28
      $region27: #{gin_layer.2} parent=11 // pred_region
        _
      $region28: #{gin_layer.2} parent=11 // pred_fallthru
        _
      // Predicated region
      $region29: #{gin_layer.2} parent=11 // pred_check
        %p301 = pneg %p201
      $region30: #{gin_layer.2} parent=11 // pred_check_branch
        %303 = sbr.rel (%p301) target = $region32
      $region31: #{gin_layer.2} parent=11 // pred_region
        _
      $region32: #{gin_layer.2} parent=11 // pred_fallthru
        _
      // Predicated region
      $region33: #{gin_layer.2} parent=11 // pred_check
        %p304 = pneg %p222
      $region34: #{gin_layer.2} parent=11 // pred_check_branch
        %306 = sbr.rel (%p304) target = $region36
      $region35: #{gin_layer.2} parent=11 // pred_region
        _
      $region36: #{gin_layer.2} parent=11 // pred_fallthru
        _
    $region12: #{gin_layer.2} parent=5 // pred_fallthru
      _
    %p307 = scmp.lt.s32.totalorder %s18, 3
    // Predicated region
    $region37: #{gin_layer.2} parent=5 // pred_check
      %p308 = pneg %p307
    $region38: #{gin_layer.2} parent=5 // pred_check_branch
      %310 = sbr.rel (%p308) target = $region40
    $region39: #{gin_layer.2} parent=5 // pred_region
      // Predicated region
      $region41: #{gin_layer.2} parent=39 // pred_check
        %p311 = pneg %p59
      $region42: #{gin_layer.2} parent=39 // pred_check_branch
        %313 = sbr.rel (%p311) target = $region44
      $region43: #{gin_layer.2} parent=39 // pred_region
        %s314 = smul.u32 4, %s18
        %p315 = scmp.lt.s32.totalorder %s314, 11
        %s316 = scalar_select %p315, %s314, 11
        %s317 = smul.addr %s316, 3
        %s318 = smul.addr %s317, 8
        %s319 = scalar_lea.vmem %s1, %s318
        %s320 = smul.u32 4, %s18
      $region44: #{gin_layer.2} parent=39 // pred_fallthru
        _
      // Predicated region
      $region45: #{gin_layer.2} parent=39 // pred_check
        %p321 = pneg %p106
      $region46: #{gin_layer.2} parent=39 // pred_check_branch
        %323 = sbr.rel (%p321) target = $region48
      $region47: #{gin_layer.2} parent=39 // pred_region
        %s324 = smul.u32 16, %s18
        %p325 = scmp.lt.s32.totalorder %s324, 47
        %s326 = scalar_select %p325, %s324, 47
        %s327 = smul.addr %s326, 8
        %s328 = scalar_lea.vmem %s3, %s327
        %s329 = smul.u32 16, %s18
      $region48: #{gin_layer.2} parent=39 // pred_fallthru
        _
      // Predicated region
      $region49: #{gin_layer.2} parent=39 // pred_check
        %p330 = pneg %p132
      $region50: #{gin_layer.2} parent=39 // pred_check_branch
        %332 = sbr.rel (%p330) target = $region52
      $region51: #{gin_layer.2} parent=39 // pred_region
        %s333 = smul.u32 16, %s18
        %p334 = scmp.lt.s32.totalorder %s333, 47
        %s335 = scalar_select %p334, %s333, 47
        %s336 = smul.addr %s335, 8
        %s337 = scalar_lea.vmem %s4, %s336
        %s338 = smul.u32 16, %s18
      $region52: #{gin_layer.2} parent=39 // pred_fallthru
        _
    $region40: #{gin_layer.2} parent=5 // pred_fallthru
      _
    %p339 = scmp.le.s32.totalorder 1, %s18
    %p340 = scmp.lt.s32.totalorder %s18, 4
    %p341 = pnand %p339, %p340
    %p342 = pneg %p341
    // Predicated region
    $region53: #{gin_layer.2} parent=5 // pred_check
      _
    $region54: #{gin_layer.2} parent=5 // pred_check_branch
      %344 = sbr.rel (%p341) target = $region56
    $region55: #{gin_layer.2} parent=5 // pred_region
      %s345 = ssub.s32 %s18, 1
      %p346 = pneg %p39
      %p347 = pneg %p36
      %s348 = smul.u32 4, %s23
      %p349 = scmp.lt.s32.totalorder %s348, 11
      %s350 = scalar_select %p349, %s348, 11
      %s351 = smul.addr %s350, 3
      %s352 = smul.addr %s351, 8
      %s353 = scalar_lea.vmem %s1, %s352
      %p354 = pneg %p65
      %p355 = pneg %p62
      %p356 = pneg %p86
      %p357 = pneg %p83
      %s358 = smul.u32 16, %s23
      %p359 = scmp.lt.s32.totalorder %s358, 47
      %s360 = scalar_select %p359, %s358, 47
      %s361 = smul.addr %s360, 8
      %s362 = scalar_lea.vmem %s3, %s361
      %p363 = pneg %p112
      %p364 = pneg %p109
      %s365 = smul.u32 16, %s23
      %p366 = scmp.lt.s32.totalorder %s365, 47
      %s367 = scalar_select %p366, %s365, 47
      %s368 = smul.addr %s367, 8
      %s369 = scalar_lea.vmem %s4, %s368
      %p370 = pneg %p138
      %p371 = pneg %p135
      %p372 = pneg %p159
      %p373 = pneg %p156
      %p374 = pneg %p180
      %p375 = pneg %p177
      %p376 = pneg %p201
      %p377 = pneg %p198
      %p378 = pneg %p222
      %p379 = pneg %p219
      %p380 = pneg %p248
      %p381 = pneg %p245
      %s382 = smul.u32 16, %s23
      %p383 = scmp.lt.s32.totalorder %s382, 47
      %s384 = scalar_select %p383, %s382, 47
      %s385 = smul.addr %s384, 4
      %s386 = scalar_lea.vmem %s9, %s385
      %p387 = pneg %p274
      %p388 = pneg %p271
      %p389 = scmp.lt.s32.totalorder %s23, 2
      %s390 = scalar_select %p389, %s23, 2
      %s391 = smul.addr %s390, 8
      %s392 = scalar_lea.vmem %s10, %s391
      %s393 = smul.u32 4, %s23
      %p394 = scmp.lt.s32.totalorder %s393, 11
      %s395 = scalar_select %p394, %s393, 11
      %s396 = smul.addr %s395, 3
      %s397 = smul.addr %s396, 8
      %s398 = scalar_lea.vmem %s1, %s397
      %s399 = smul.u32 4, %s23
      %s400 = smul.u32 16, %s23
      %p401 = scmp.lt.s32.totalorder %s400, 47
      %s402 = scalar_select %p401, %s400, 47
      %s403 = smul.addr %s402, 8
      %s404 = scalar_lea.vmem %s3, %s403
      %s405 = smul.u32 16, %s23
      %s406 = smul.u32 16, %s23
      %p407 = scmp.lt.s32.totalorder %s406, 47
      %s408 = scalar_select %p407, %s406, 47
      %s409 = smul.addr %s408, 8
      %s410 = scalar_lea.vmem %s4, %s409
      %s411 = smul.u32 16, %s23
      %s412 = smul.u32 16, %s23
      %p413 = scmp.lt.s32.totalorder %s412, 47
      %s414 = scalar_select %p413, %s412, 47
      %s415 = smul.addr %s414, 4
      %s416 = scalar_lea.vmem %s9, %s415
      %s417 = smul.u32 16, %s23
      %p418 = scmp.lt.s32.totalorder %s23, 2
      %s419 = scalar_select %p418, %s23, 2
      %s420 = smul.addr %s419, 8
      %s421 = scalar_lea.vmem %s10, %s420
      %s423 = sld [smem:[#allocation2]]
      %s424 = sadd.f32 %s423, 1.0
      %v425 = vld [vmem:[%s398] sm:$0xff]
      %v426 = vld [vmem:[%s398 + $0x8] sm:$0xff]
      %v427 = vld [vmem:[%s398 + $0x10] sm:$0xff]
      %v428 = vld [vmem:[%s398 + $0x18] sm:$0xff]
      %v429 = vld [vmem:[%s398 + $0x20] sm:$0xff]
      %v430 = vld [vmem:[%s398 + $0x28] sm:$0xff]
      %v431 = vld [vmem:[%s398 + $0x30] sm:$0xff]
      %v432 = vld [vmem:[%s398 + $0x38] sm:$0xff]
      %v433 = vld [vmem:[%s398 + $0x40] sm:$0xff]
      %v434 = vld [vmem:[%s398 + $0x48] sm:$0xff]
      %v435 = vld [vmem:[%s398 + $0x50] sm:$0xff]
      %v436 = vld [vmem:[%s398 + $0x58] sm:$0xff]
      %v437 = vunpack.c.l.s8.bf16 %v425
      %v438 = vunpack.c.l.s8.bf16 %v426
      %v439 = vunpack.c.l.s8.bf16 %v427
      %v440 = vunpack.c.h.s8.bf16 %v425
      %v441 = vunpack.c.h.s8.bf16 %v426
      %v442 = vunpack.c.h.s8.bf16 %v427
      %v443 = vunpack.c.l.s8.bf16 %v428
      %v444 = vunpack.c.l.s8.bf16 %v429
      %v445 = vunpack.c.l.s8.bf16 %v430
      %v446 = vunpack.c.h.s8.bf16 %v428
      %v447 = vunpack.c.h.s8.bf16 %v429
      %v448 = vunpack.c.h.s8.bf16 %v430
      %v449 = vunpack.c.l.s8.bf16 %v431
      %v450 = vunpack.c.l.s8.bf16 %v432
      %v451 = vunpack.c.l.s8.bf16 %v433
      %v452 = vunpack.c.h.s8.bf16 %v431
      %v453 = vunpack.c.h.s8.bf16 %v432
      %v454 = vunpack.c.h.s8.bf16 %v433
      %v455 = vunpack.c.l.s8.bf16 %v434
      %v456 = vunpack.c.l.s8.bf16 %v435
      %v457 = vunpack.c.l.s8.bf16 %v436
      %v458 = vunpack.c.h.s8.bf16 %v434
      %v459 = vunpack.c.h.s8.bf16 %v435
      %v460 = vunpack.c.h.s8.bf16 %v436
      %v461 = vld [vmem:[%s2] sm:$0xf]
      %v462 = vld [vmem:[%s2 + $0x4] sm:$0xf]
      %v463 = vld [vmem:[%s2 + $0x8] sm:$0xf]
      %v464 = vld [vmem:[%s2 + $0xc] sm:$0xf]
      %v465 = vld [vmem:[%s2 + $0x10] sm:$0xf]
      %v466 = vld [vmem:[%s2 + $0x14] sm:$0xf]
      %v467 = vld [vmem:[%s2 + $0x18] sm:$0xf]
      %v468 = vld [vmem:[%s2 + $0x1c] sm:$0xf]
      %v469 = vld [vmem:[%s2 + $0x20] sm:$0xf]
      %v470 = vld [vmem:[%s2 + $0x24] sm:$0xf]
      %v471 = vld [vmem:[%s2 + $0x28] sm:$0xf]
      %v472 = vld [vmem:[%s2 + $0x2c] sm:$0xf]
      %v473 = vld [vmem:[%s2 + $0x30] sm:$0xf]
      %v474 = vld [vmem:[%s2 + $0x34] sm:$0xf]
      %v475 = vld [vmem:[%s2 + $0x38] sm:$0xf]
      %v476 = vld [vmem:[%s2 + $0x3c] sm:$0xf]
      %v477 = vld [vmem:[%s2 + $0x40] sm:$0xf]
      %v478 = vld [vmem:[%s2 + $0x44] sm:$0xf]
      %v479 = vld [vmem:[%s2 + $0x48] sm:$0xf]
      %v480 = vld [vmem:[%s2 + $0x4c] sm:$0xf]
      %v481 = vld [vmem:[%s2 + $0x50] sm:$0xf]
      %v482 = vld [vmem:[%s2 + $0x54] sm:$0xf]
      %v483 = vld [vmem:[%s2 + $0x58] sm:$0xf]
      %v484 = vld [vmem:[%s2 + $0x5c] sm:$0xf]
      %v485 = vld [vmem:[%s2 + $0x60] sm:$0xf]
      %v486 = vld [vmem:[%s2 + $0x64] sm:$0xf]
      %v487 = vld [vmem:[%s2 + $0x68] sm:$0xf]
      %v488 = vld [vmem:[%s2 + $0x6c] sm:$0xf]
      %v489 = vld [vmem:[%s2 + $0x70] sm:$0xf]
      %v490 = vld [vmem:[%s2 + $0x74] sm:$0xf]
      %v491 = vld [vmem:[%s2 + $0x78] sm:$0xf]
      %v492 = vld [vmem:[%s2 + $0x7c] sm:$0xf]
      %v493 = vld [vmem:[%s2 + $0x80] sm:$0xf]
      %v494 = vld [vmem:[%s2 + $0x84] sm:$0xf]
      %v495 = vld [vmem:[%s2 + $0x88] sm:$0xf]
      %v496 = vld [vmem:[%s2 + $0x8c] sm:$0xf]
      %v497 = vld [vmem:[%s2 + $0x90] sm:$0xf]
      %v498 = vld [vmem:[%s2 + $0x94] sm:$0xf]
      %v499 = vld [vmem:[%s2 + $0x98] sm:$0xf]
      %v500 = vld [vmem:[%s2 + $0x9c] sm:$0xf]
      %v501 = vld [vmem:[%s2 + $0xa0] sm:$0xf]
      %v502 = vld [vmem:[%s2 + $0xa4] sm:$0xf]
      %v503 = vld [vmem:[%s2 + $0xa8] sm:$0xf]
      %v504 = vld [vmem:[%s2 + $0xac] sm:$0xf]
      %v505 = vld [vmem:[%s2 + $0xb0] sm:$0xf]
      %v506 = vld [vmem:[%s2 + $0xb4] sm:$0xf]
      %v507 = vld [vmem:[%s2 + $0xb8] sm:$0xf]
      %v508 = vld [vmem:[%s2 + $0xbc] sm:$0xf]
      %v557 = vunpack.c.l.b16 %v461
      %v558 = vunpack.c.l.b16 %v462
      %v559 = vunpack.c.l.b16 %v463
      %v560 = vunpack.c.l.b16 %v464
      %v561 = vunpack.c.l.b16 %v465
      %v562 = vunpack.c.l.b16 %v466
      %v563 = vunpack.c.l.b16 %v467
      %v564 = vunpack.c.l.b16 %v468
      %v565 = vunpack.c.l.b16 %v469
      %v566 = vunpack.c.l.b16 %v470
      %v567 = vunpack.c.l.b16 %v471
      %v568 = vunpack.c.l.b16 %v472
      %v569 = vunpack.c.l.b16 %v473
      %v570 = vunpack.c.l.b16 %v474
      %v571 = vunpack.c.l.b16 %v475
      %v572 = vunpack.c.l.b16 %v476
      %v573 = vunpack.c.l.b16 %v477
      %v574 = vunpack.c.l.b16 %v478
      %v575 = vunpack.c.l.b16 %v479
      %v576 = vunpack.c.l.b16 %v480
      %v577 = vunpack.c.l.b16 %v481
      %v578 = vunpack.c.l.b16 %v482
      %v579 = vunpack.c.l.b16 %v483
      %v580 = vunpack.c.l.b16 %v484
      %v581 = vunpack.c.l.b16 %v485
      %v582 = vunpack.c.l.b16 %v486
      %v583 = vunpack.c.l.b16 %v487
      %v584 = vunpack.c.l.b16 %v488
      %v585 = vunpack.c.l.b16 %v489
      %v586 = vunpack.c.l.b16 %v490
      %v587 = vunpack.c.l.b16 %v491
      %v588 = vunpack.c.l.b16 %v492
      %v589 = vunpack.c.l.b16 %v493
      %v590 = vunpack.c.l.b16 %v494
      %v591 = vunpack.c.l.b16 %v495
      %v592 = vunpack.c.l.b16 %v496
      %v593 = vunpack.c.l.b16 %v497
      %v594 = vunpack.c.l.b16 %v498
      %v595 = vunpack.c.l.b16 %v499
      %v596 = vunpack.c.l.b16 %v500
      %v597 = vunpack.c.l.b16 %v501
      %v598 = vunpack.c.l.b16 %v502
      %v599 = vunpack.c.l.b16 %v503
      %v600 = vunpack.c.l.b16 %v504
      %v601 = vunpack.c.l.b16 %v505
      %v602 = vunpack.c.l.b16 %v506
      %v603 = vunpack.c.l.b16 %v507
      %v604 = vunpack.c.l.b16 %v508
      %v605 = vpack.c.b16 %v558, %v557
      %v606 = vpack.c.b16 %v560, %v559
      %v607 = vpack.c.b16 %v562, %v561
      %v608 = vpack.c.b16 %v564, %v563
      %v609 = vpack.c.b16 %v566, %v565
      %v610 = vpack.c.b16 %v568, %v567
      %v611 = vpack.c.b16 %v570, %v569
      %v612 = vpack.c.b16 %v572, %v571
      %v613 = vpack.c.b16 %v574, %v573
      %v614 = vpack.c.b16 %v576, %v575
      %v615 = vpack.c.b16 %v578, %v577
      %v616 = vpack.c.b16 %v580, %v579
      %v617 = vpack.c.b16 %v582, %v581
      %v618 = vpack.c.b16 %v584, %v583
      %v619 = vpack.c.b16 %v586, %v585
      %v620 = vpack.c.b16 %v588, %v587
      %v621 = vpack.c.b16 %v590, %v589
      %v622 = vpack.c.b16 %v592, %v591
      %v623 = vpack.c.b16 %v594, %v593
      %v624 = vpack.c.b16 %v596, %v595
      %v625 = vpack.c.b16 %v598, %v597
      %v626 = vpack.c.b16 %v600, %v599
      %v627 = vpack.c.b16 %v602, %v601
      %v628 = vpack.c.b16 %v604, %v603
      %653 = vmatprep.subr.bf16.mxu0 0
      %654 = vmatpush1.bf16.msra.mxu0 %v605
      %655 = vmatprep.subr.bf16.mxu0 0
      %656 = vmatpush1.bf16.msra.mxu0 %v606
      %657 = vmatprep.subr.bf16.mxu0 0
      %658 = vmatpush1.bf16.msra.mxu0 %v607
      %659 = vmatprep.subr.bf16.mxu0 0
      %660 = vmatpush1.bf16.msra.mxu0 %v608
      %661 = vmatprep.subr.bf16.mxu0 0
      %662 = vmatpush1.bf16.msra.mxu0 %v609
      %663 = vmatprep.subr.bf16.mxu0 0
      %664 = vmatpush1.bf16.msra.mxu0 %v610
      %665 = vmatprep.subr.bf16.mxu0 0
      %666 = vmatpush1.bf16.msra.mxu0 %v611
      %667 = vmatprep.subr.bf16.mxu0 0
      %668 = vmatpush1.bf16.msra.mxu0 %v612
      %669 = vmatprep.subr.bf16.mxu0 0
      %670 = vmatpush1.bf16.msra.mxu0 %v613
      %671 = vmatprep.subr.bf16.mxu0 0
      %672 = vmatpush1.bf16.msra.mxu0 %v614
      %673 = vmatprep.subr.bf16.mxu0 0
      %674 = vmatpush1.bf16.msra.mxu0 %v615
      %675 = vmatprep.subr.bf16.mxu0 0
      %676 = vmatpush1.bf16.msra.mxu0 %v616
      %677 = vmatprep.subr.bf16.mxu0 0
      %678 = vmatpush1.bf16.msra.mxu0 %v617
      %679 = vmatprep.subr.bf16.mxu0 0
      %680 = vmatpush1.bf16.msra.mxu0 %v618
      %681 = vmatprep.subr.bf16.mxu0 0
      %682 = vmatpush1.bf16.msra.mxu0 %v619
      %683 = vmatprep.subr.bf16.mxu0 0
      %684 = vmatpush1.bf16.msra.mxu0 %v620
      %685 = vmatprep.mubr.bf16.mxu0 %v438
      %686 = vmatmul.mubr.bf16.gmra.mrb[0].mxu0 %v437
      %v687 = vpop.f32.mrb[0].mxu0
      %v688 = vadd.f32 0.0, %v687
      %v689 = vpop.f32.mrb[0].mxu0
      %v690 = vpop.f32.mrb[0].mxu0
      %v691 = vadd.f32 0.0, %v690
      %v692 = vpop.f32.mrb[0].mxu0
      %693 = vmatprep.mubr.bf16.mxu0 %v441
      %694 = vmatmul.mubr.bf16.gmra.mrb[0].mxu0 %v440
      %v695 = vpop.f32.mrb[0].mxu0
      %v696 = vadd.f32 0.0, %v695
      %v697 = vpop.f32.mrb[0].mxu0
      %v698 = vpop.f32.mrb[0].mxu0
      %v699 = vadd.f32 0.0, %v698
      %v700 = vpop.f32.mrb[0].mxu0
      %701 = vmatprep.mubr.bf16.mxu0 %v444
      %702 = vmatmul.mubr.bf16.gmra.mrb[0].mxu0 %v443
      %v703 = vpop.f32.mrb[0].mxu0
      %v704 = vadd.f32 0.0, %v703
      %v705 = vpop.f32.mrb[0].mxu0
      %v706 = vpop.f32.mrb[0].mxu0
      %v707 = vadd.f32 0.0, %v706
      %v708 = vpop.f32.mrb[0].mxu0
      %709 = vmatprep.mubr.bf16.mxu0 %v447
      %710 = vmatmul.mubr.bf16.gmra.mrb[0].mxu0 %v446
      %v711 = vpop.f32.mrb[0].mxu0
      %v712 = vadd.f32 0.0, %v711
      %v713 = vpop.f32.mrb[0].mxu0
      %v714 = vpop.f32.mrb[0].mxu0
      %v715 = vadd.f32 0.0, %v714
      %v716 = vpop.f32.mrb[0].mxu0
      %717 = vmatprep.mubr.bf16.mxu0 %v450
      %718 = vmatmul.mubr.bf16.gmra.mrb[0].mxu0 %v449
      %v719 = vpop.f32.mrb[0].mxu0
      %v720 = vadd.f32 0.0, %v719
      %v721 = vpop.f32.mrb[0].mxu0
      %v722 = vpop.f32.mrb[0].mxu0
      %v723 = vadd.f32 0.0, %v722
      %v724 = vpop.f32.mrb[0].mxu0
      %725 = vmatprep.mubr.bf16.mxu0 %v453
      %726 = vmatmul.mubr.bf16.gmra.mrb[0].mxu0 %v452
      %v727 = vpop.f32.mrb[0].mxu0
      %v728 = vadd.f32 0.0, %v727
      %v729 = vpop.f32.mrb[0].mxu0
      %v730 = vpop.f32.mrb[0].mxu0
      %v731 = vadd.f32 0.0, %v730
      %v732 = vpop.f32.mrb[0].mxu0
      %733 = vmatprep.mubr.bf16.mxu0 %v456
      %734 = vmatmul.mubr.bf16.gmra.mrb[0].mxu0 %v455
      %v735 = vpop.f32.mrb[0].mxu0
      %v736 = vadd.f32 0.0, %v735
      %v737 = vpop.f32.mrb[0].mxu0
      %v738 = vpop.f32.mrb[0].mxu0
      %v739 = vadd.f32 0.0, %v738
      %v740 = vpop.f32.mrb[0].mxu0
      %741 = vmatprep.mubr.bf16.mxu0 %v459
      %742 = vmatmul.mubr.bf16.gmra.mrb[0].mxu0 %v458
      %v743 = vpop.f32.mrb[0].mxu0
      %v744 = vadd.f32 0.0, %v743
      %v745 = vpop.f32.mrb[0].mxu0
      %v746 = vpop.f32.mrb[0].mxu0
      %v747 = vadd.f32 0.0, %v746
      %v748 = vpop.f32.mrb[0].mxu0
      %749 = vdwg.mxu0
      %750 = vmatprep.subr.bf16.mxu0 0
      %751 = vmatpush1.bf16.msra.mxu0 %v621
      %752 = vmatprep.subr.bf16.mxu0 0
      %753 = vmatpush1.bf16.msra.mxu0 %v622
      %754 = vmatprep.subr.bf16.mxu0 0
      %755 = vmatpush1.bf16.msra.mxu0 %v623
      %756 = vmatprep.subr.bf16.mxu0 0
      %757 = vmatpush1.bf16.msra.mxu0 %v624
      %758 = vmatprep.subr.bf16.mxu0 0
      %759 = vmatpush1.bf16.msra.mxu0 %v625
      %760 = vmatprep.subr.bf16.mxu0 0
      %761 = vmatpush1.bf16.msra.mxu0 %v626
      %762 = vmatprep.subr.bf16.mxu0 0
      %763 = vmatpush1.bf16.msra.mxu0 %v627
      %764 = vmatprep.subr.bf16.mxu0 0
      %765 = vmatpush1.bf16.msra.mxu0 %v628
      %766 = vmatprep.subr.bf16.mxu0 0
      %767 = vmatpush1.bf16.msra.mxu0 0
      %768 = vmatprep.subr.bf16.mxu0 0
      %769 = vmatpush1.bf16.msra.mxu0 0
      %770 = vmatprep.subr.bf16.mxu0 0
      %771 = vmatpush1.bf16.msra.mxu0 0
      %772 = vmatprep.subr.bf16.mxu0 0
      %773 = vmatpush1.bf16.msra.mxu0 0
      %774 = vmatprep.subr.bf16.mxu0 0
      %775 = vmatpush1.bf16.msra.mxu0 0
      %776 = vmatprep.subr.bf16.mxu0 0
      %777 = vmatpush1.bf16.msra.mxu0 0
      %778 = vmatprep.subr.bf16.mxu0 0
      %779 = vmatpush1.bf16.msra.mxu0 0
      %780 = vmatprep.subr.bf16.mxu0 0
      %781 = vmatpush1.bf16.msra.mxu0 0
      %782 = vmatprep.mubr.bf16.mxu0 0
      %783 = vmatmul.mubr.bf16.gmra.mrb[0].mxu0 %v439
      %v784 = vpop.f32.mrb[0].mxu0
      %v785 = vadd.f32 %v688, %v784
      %v786 = vpop.f32.mrb[0].mxu0
      %v787 = vpop.f32.mrb[0].mxu0
      %v788 = vadd.f32 %v691, %v787
      %v789 = vpop.f32.mrb[0].mxu0
      %790 = vmatprep.mubr.bf16.mxu0 0
      %791 = vmatmul.mubr.bf16.gmra.mrb[0].mxu0 %v442
      %v792 = vpop.f32.mrb[0].mxu0
      %v793 = vadd.f32 %v696, %v792
      %v794 = vpop.f32.mrb[0].mxu0
      %v795 = vpop.f32.mrb[0].mxu0
      %v796 = vadd.f32 %v699, %v795
      %v797 = vpop.f32.mrb[0].mxu0
      %798 = vmatprep.mubr.bf16.mxu0 0
      %799 = vmatmul.mubr.bf16.gmra.mrb[0].mxu0 %v445
      %v800 = vpop.f32.mrb[0].mxu0
      %v801 = vadd.f32 %v704, %v800
      %v802 = vpop.f32.mrb[0].mxu0
      %v803 = vpop.f32.mrb[0].mxu0
      %v804 = vadd.f32 %v707, %v803
      %v805 = vpop.f32.mrb[0].mxu0
      %806 = vmatprep.mubr.bf16.mxu0 0
      %807 = vmatmul.mubr.bf16.gmra.mrb[0].mxu0 %v448
      %v808 = vpop.f32.mrb[0].mxu0
      %v809 = vadd.f32 %v712, %v808
      %v810 = vpop.f32.mrb[0].mxu0
      %v811 = vpop.f32.mrb[0].mxu0
      %v812 = vadd.f32 %v715, %v811
      %v813 = vpop.f32.mrb[0].mxu0
      %814 = vmatprep.mubr.bf16.mxu0 0
      %815 = vmatmul.mubr.bf16.gmra.mrb[0].mxu0 %v451
      %v816 = vpop.f32.mrb[0].mxu0
      %v817 = vadd.f32 %v720, %v816
      %v818 = vpop.f32.mrb[0].mxu0
      %v819 = vpop.f32.mrb[0].mxu0
      %v820 = vadd.f32 %v723, %v819
      %v821 = vpop.f32.mrb[0].mxu0
      %822 = vmatprep.mubr.bf16.mxu0 0
      %823 = vmatmul.mubr.bf16.gmra.mrb[0].mxu0 %v454
      %v824 = vpop.f32.mrb[0].mxu0
      %v825 = vadd.f32 %v728, %v824
      %v826 = vpop.f32.mrb[0].mxu0
      %v827 = vpop.f32.mrb[0].mxu0
      %v828 = vadd.f32 %v731, %v827
      %v829 = vpop.f32.mrb[0].mxu0
      %830 = vmatprep.mubr.bf16.mxu0 0
      %831 = vmatmul.mubr.bf16.gmra.mrb[0].mxu0 %v457
      %v832 = vpop.f32.mrb[0].mxu0
      %v833 = vadd.f32 %v736, %v832
      %v834 = vpop.f32.mrb[0].mxu0
      %v835 = vpop.f32.mrb[0].mxu0
      %v836 = vadd.f32 %v739, %v835
      %v837 = vpop.f32.mrb[0].mxu0
      %838 = vmatprep.mubr.bf16.mxu0 0
      %839 = vmatmul.mubr.bf16.gmra.mrb[0].mxu0 %v460
      %v840 = vpop.f32.mrb[0].mxu0
      %v841 = vadd.f32 %v744, %v840
      %v842 = vpop.f32.mrb[0].mxu0
      %v843 = vpop.f32.mrb[0].mxu0
      %v844 = vadd.f32 %v747, %v843
      %v845 = vpop.f32.mrb[0].mxu0
      %846 = vdwg.mxu0
      %v847 = vld [vmem:[%s404] sm:$0xff]
      %v848 = vld [vmem:[%s404 + $0x8] sm:$0xff]
      %v849 = vld [vmem:[%s404 + $0x10] sm:$0xff]
      %v850 = vld [vmem:[%s404 + $0x18] sm:$0xff]
      %v851 = vld [vmem:[%s404 + $0x20] sm:$0xff]
      %v852 = vld [vmem:[%s404 + $0x28] sm:$0xff]
      %v853 = vld [vmem:[%s404 + $0x30] sm:$0xff]
      %v854 = vld [vmem:[%s404 + $0x38] sm:$0xff]
      %v855 = vld [vmem:[%s404 + $0x40] sm:$0xff]
      %v856 = vld [vmem:[%s404 + $0x48] sm:$0xff]
      %v857 = vld [vmem:[%s404 + $0x50] sm:$0xff]
      %v858 = vld [vmem:[%s404 + $0x58] sm:$0xff]
      %v859 = vld [vmem:[%s404 + $0x60] sm:$0xff]
      %v860 = vld [vmem:[%s404 + $0x68] sm:$0xff]
      %v861 = vld [vmem:[%s404 + $0x70] sm:$0xff]
      %v862 = vld [vmem:[%s404 + $0x78] sm:$0xff]
      %v863 = vstv %s424
      %v864 = vmul.f32 %v863, %v847
      %v865 = vmul.f32 %v863, %v848
      %v866 = vmul.f32 %v863, %v849
      %v867 = vmul.f32 %v863, %v850
      %v868 = vmul.f32 %v863, %v851
      %v869 = vmul.f32 %v863, %v852
      %v870 = vmul.f32 %v863, %v853
      %v871 = vmul.f32 %v863, %v854
      %v872 = vmul.f32 %v863, %v855
      %v873 = vmul.f32 %v863, %v856
      %v874 = vmul.f32 %v863, %v857
      %v875 = vmul.f32 %v863, %v858
      %v876 = vmul.f32 %v863, %v859
      %v877 = vmul.f32 %v863, %v860
      %v878 = vmul.f32 %v863, %v861
      %v879 = vmul.f32 %v863, %v862
      %v880 = vadd.f32 %v864, %v785
      %v881 = vadd.f32 %v865, %v788
      %v882 = vadd.f32 %v866, %v793
      %v883 = vadd.f32 %v867, %v796
      %v884 = vadd.f32 %v868, %v801
      %v885 = vadd.f32 %v869, %v804
      %v886 = vadd.f32 %v870, %v809
      %v887 = vadd.f32 %v871, %v812
      %v888 = vadd.f32 %v872, %v817
      %v889 = vadd.f32 %v873, %v820
      %v890 = vadd.f32 %v874, %v825
      %v891 = vadd.f32 %v875, %v828
      %v892 = vadd.f32 %v876, %v833
      %v893 = vadd.f32 %v877, %v836
      %v894 = vadd.f32 %v878, %v841
      %v895 = vadd.f32 %v879, %v844
      %v896 = vld [vmem:[%s5] sm:$0xff]
      %v897 = vld [vmem:[%s5 + $0x8] sm:$0xff]
      %v898 = vld [vmem:[%s5 + $0x10] sm:$0xff]
      %v899 = vld [vmem:[%s5 + $0x18] sm:$0xff]
      %v900 = vld [vmem:[%s5 + $0x20] sm:$0xff]
      %v901 = vld [vmem:[%s5 + $0x28] sm:$0xff]
      %v902 = vld [vmem:[%s5 + $0x30] sm:$0xff]
      %v903 = vld [vmem:[%s5 + $0x38] sm:$0xff]
      %v904 = vld [vmem:[%s5 + $0x40] sm:$0xff]
      %v905 = vld [vmem:[%s5 + $0x48] sm:$0xff]
      %v906 = vld [vmem:[%s5 + $0x50] sm:$0xff]
      %v907 = vld [vmem:[%s5 + $0x58] sm:$0xff]
      %v908 = vld [vmem:[%s5 + $0x60] sm:$0xff]
      %v909 = vld [vmem:[%s5 + $0x68] sm:$0xff]
      %v910 = vld [vmem:[%s5 + $0x70] sm:$0xff]
      %v911 = vld [vmem:[%s5 + $0x78] sm:$0xff]
      %v912 = vld [vmem:[%s6] sm:$0x1]
      %v914 = vlaneseq
      %v915 = vshrl.u32 %v914, 7
      %v916 = vsub.s32 0, %v915
      %v917 = vrot.slane %v912, %v916
      %919 = vmatprep.subr.mxu0 0.0
      %920 = vmatpush1.msra.mxu0 %v896
      %921 = vmatprep.subr.mxu0 0.0
      %922 = vmatpush1.msra.mxu0 %v897
      %923 = vmatprep.subr.mxu0 0.0
      %924 = vmatpush1.msra.mxu0 %v898
      %925 = vmatprep.subr.mxu0 0.0
      %926 = vmatpush1.msra.mxu0 %v899
      %927 = vmatprep.subr.mxu0 0.0
      %928 = vmatpush1.msra.mxu0 %v900
      %929 = vmatprep.subr.mxu0 0.0
      %930 = vmatpush1.msra.mxu0 %v901
      %931 = vmatprep.subr.mxu0 0.0
      %932 = vmatpush1.msra.mxu0 %v902
      %933 = vmatprep.subr.mxu0 0.0
      %934 = vmatpush1.msra.mxu0 %v903
      %935 = vmatprep.subr.mxu0 0.0
      %936 = vmatpush1.msra.mxu0 %v904
      %937 = vmatprep.subr.mxu0 0.0
      %938 = vmatpush1.msra.mxu0 %v905
      %939 = vmatprep.subr.mxu0 0.0
      %940 = vmatpush1.msra.mxu0 %v906
      %941 = vmatprep.subr.mxu0 0.0
      %942 = vmatpush1.msra.mxu0 %v907
      %943 = vmatprep.subr.mxu0 0.0
      %944 = vmatpush1.msra.mxu0 %v908
      %945 = vmatprep.subr.mxu0 0.0
      %946 = vmatpush1.msra.mxu0 %v909
      %947 = vmatprep.subr.mxu0 0.0
      %948 = vmatpush1.msra.mxu0 %v910
      %949 = vmatprep.subr.mxu0 0.0
      %950 = vmatpush1.msra.mxu0 %v911
      %951 = vmatprep.subr.mxu0 0.0
      %952 = vmatpush1.msra.mxu0 0.0
      %953 = vmatprep.subr.mxu0 0.0
      %954 = vmatpush1.msra.mxu0 0.0
      %955 = vmatprep.subr.mxu0 0.0
      %956 = vmatpush1.msra.mxu0 0.0
      %957 = vmatprep.subr.mxu0 0.0
      %958 = vmatpush1.msra.mxu0 0.0
      %959 = vmatprep.subr.mxu0 0.0
      %960 = vmatpush1.msra.mxu0 0.0
      %961 = vmatprep.subr.mxu0 0.0
      %962 = vmatpush1.msra.mxu0 0.0
      %963 = vmatprep.subr.mxu0 0.0
      %964 = vmatpush1.msra.mxu0 0.0
      %965 = vmatprep.subr.mxu0 0.0
      %966 = vmatpush1.msra.mxu0 0.0
      %967 = vmatprep.subr.mxu0 0.0
      %968 = vmatpush1.msra.mxu0 0.0
      %969 = vmatprep.subr.mxu0 0.0
      %970 = vmatpush1.msra.mxu0 0.0
      %971 = vmatprep.subr.mxu0 0.0
      %972 = vmatpush1.msra.mxu0 0.0
      %973 = vmatprep.subr.mxu0 0.0
      %974 = vmatpush1.msra.mxu0 0.0
      %975 = vmatprep.subr.mxu0 0.0
      %976 = vmatpush1.msra.mxu0 0.0
      %977 = vmatprep.subr.mxu0 0.0
      %978 = vmatpush1.msra.mxu0 0.0
      %979 = vmatprep.subr.mxu0 0.0
      %980 = vmatpush1.msra.mxu0 0.0
      %981 = vmatprep.subr.mxu0 0.0
      %982 = vmatpush1.msra.mxu0 0.0
      %983 = vmatprep.mubr.f32.mxu0 0.0
      %984 = vmatmul.mubr.f32.gmra.mrb[0].mxu0 %v880
      %v985 = vpop.f32.mrb[0].mxu0
      %v986 = vadd.f32 %v917, %v985
      %v987 = vpop.f32.mrb[0].mxu0
      %988 = vmatprep.mubr.f32.mxu0 0.0
      %989 = vmatmul.mubr.f32.gmra.mrb[0].mxu0 %v881
      %v990 = vpop.f32.mrb[0].mxu0
      %v991 = vadd.f32 %v917, %v990
      %v992 = vpop.f32.mrb[0].mxu0
      %993 = vmatprep.mubr.f32.mxu0 0.0
      %994 = vmatmul.mubr.f32.gmra.mrb[0].mxu0 %v882
      %v995 = vpop.f32.mrb[0].mxu0
      %v996 = vadd.f32 %v917, %v995
      %v997 = vpop.f32.mrb[0].mxu0
      %998 = vmatprep.mubr.f32.mxu0 0.0
      %999 = vmatmul.mubr.f32.gmra.mrb[0].mxu0 %v883
      %v1000 = vpop.f32.mrb[0].mxu0
      %v1001 = vadd.f32 %v917, %v1000
      %v1002 = vpop.f32.mrb[0].mxu0
      %1003 = vmatprep.mubr.f32.mxu0 0.0
      %1004 = vmatmul.mubr.f32.gmra.mrb[0].mxu0 %v884
      %v1005 = vpop.f32.mrb[0].mxu0
      %v1006 = vadd.f32 %v917, %v1005
      %v1007 = vpop.f32.mrb[0].mxu0
      %1008 = vmatprep.mubr.f32.mxu0 0.0
      %1009 = vmatmul.mubr.f32.gmra.mrb[0].mxu0 %v885
      %v1010 = vpop.f32.mrb[0].mxu0
      %v1011 = vadd.f32 %v917, %v1010
      %v1012 = vpop.f32.mrb[0].mxu0
      %1013 = vmatprep.mubr.f32.mxu0 0.0
      %1014 = vmatmul.mubr.f32.gmra.mrb[0].mxu0 %v886
      %v1015 = vpop.f32.mrb[0].mxu0
      %v1016 = vadd.f32 %v917, %v1015
      %v1017 = vpop.f32.mrb[0].mxu0
      %1018 = vmatprep.mubr.f32.mxu0 0.0
      %1019 = vmatmul.mubr.f32.gmra.mrb[0].mxu0 %v887
      %v1020 = vpop.f32.mrb[0].mxu0
      %v1021 = vadd.f32 %v917, %v1020
      %v1022 = vpop.f32.mrb[0].mxu0
      %1023 = vmatprep.mubr.f32.mxu0 0.0
      %1024 = vmatmul.mubr.f32.gmra.mrb[0].mxu0 %v888
      %v1025 = vpop.f32.mrb[0].mxu0
      %v1026 = vadd.f32 %v917, %v1025
      %v1027 = vpop.f32.mrb[0].mxu0
      %1028 = vmatprep.mubr.f32.mxu0 0.0
      %1029 = vmatmul.mubr.f32.gmra.mrb[0].mxu0 %v889
      %v1030 = vpop.f32.mrb[0].mxu0
      %v1031 = vadd.f32 %v917, %v1030
      %v1032 = vpop.f32.mrb[0].mxu0
      %1033 = vmatprep.mubr.f32.mxu0 0.0
      %1034 = vmatmul.mubr.f32.gmra.mrb[0].mxu0 %v890
      %v1035 = vpop.f32.mrb[0].mxu0
      %v1036 = vadd.f32 %v917, %v1035
      %v1037 = vpop.f32.mrb[0].mxu0
      %1038 = vmatprep.mubr.f32.mxu0 0.0
      %1039 = vmatmul.mubr.f32.gmra.mrb[0].mxu0 %v891
      %v1040 = vpop.f32.mrb[0].mxu0
      %v1041 = vadd.f32 %v917, %v1040
      %v1042 = vpop.f32.mrb[0].mxu0
      %1043 = vmatprep.mubr.f32.mxu0 0.0
      %1044 = vmatmul.mubr.f32.gmra.mrb[0].mxu0 %v892
      %v1045 = vpop.f32.mrb[0].mxu0
      %v1046 = vadd.f32 %v917, %v1045
      %v1047 = vpop.f32.mrb[0].mxu0
      %1048 = vmatprep.mubr.f32.mxu0 0.0
      %1049 = vmatmul.mubr.f32.gmra.mrb[0].mxu0 %v893
      %v1050 = vpop.f32.mrb[0].mxu0
      %v1051 = vadd.f32 %v917, %v1050
      %v1052 = vpop.f32.mrb[0].mxu0
      %1053 = vmatprep.mubr.f32.mxu0 0.0
      %1054 = vmatmul.mubr.f32.gmra.mrb[0].mxu0 %v894
      %v1055 = vpop.f32.mrb[0].mxu0
      %v1056 = vadd.f32 %v917, %v1055
      %v1057 = vpop.f32.mrb[0].mxu0
      %1058 = vmatprep.mubr.f32.mxu0 0.0
      %1059 = vmatmul.mubr.f32.gmra.mrb[0].mxu0 %v895
      %v1060 = vpop.f32.mrb[0].mxu0
      %v1061 = vadd.f32 %v917, %v1060
      %v1062 = vpop.f32.mrb[0].mxu0
      %1063 = vdwg.mxu0
      %v1064 = vmax.f32 %v986, 0.0
      %v1065 = vmax.f32 %v991, 0.0
      %v1066 = vmax.f32 %v996, 0.0
      %v1067 = vmax.f32 %v1001, 0.0
      %v1068 = vmax.f32 %v1006, 0.0
      %v1069 = vmax.f32 %v1011, 0.0
      %v1070 = vmax.f32 %v1016, 0.0
      %v1071 = vmax.f32 %v1021, 0.0
      %v1072 = vmax.f32 %v1026, 0.0
      %v1073 = vmax.f32 %v1031, 0.0
      %v1074 = vmax.f32 %v1036, 0.0
      %v1075 = vmax.f32 %v1041, 0.0
      %v1076 = vmax.f32 %v1046, 0.0
      %v1077 = vmax.f32 %v1051, 0.0
      %v1078 = vmax.f32 %v1056, 0.0
      %v1079 = vmax.f32 %v1061, 0.0
      %v1080 = vld [vmem:[%s7] sm:$0xff]
      %v1081 = vld [vmem:[%s7 + $0x8] sm:$0xff]
      %v1082 = vld [vmem:[%s7 + $0x10] sm:$0xff]
      %v1083 = vld [vmem:[%s7 + $0x18] sm:$0xff]
      %v1084 = vld [vmem:[%s7 + $0x20] sm:$0xff]
      %v1085 = vld [vmem:[%s7 + $0x28] sm:$0xff]
      %v1086 = vld [vmem:[%s7 + $0x30] sm:$0xff]
      %v1087 = vld [vmem:[%s7 + $0x38] sm:$0xff]
      %v1088 = vld [vmem:[%s7 + $0x40] sm:$0xff]
      %v1089 = vld [vmem:[%s7 + $0x48] sm:$0xff]
      %v1090 = vld [vmem:[%s7 + $0x50] sm:$0xff]
      %v1091 = vld [vmem:[%s7 + $0x58] sm:$0xff]
      %v1092 = vld [vmem:[%s7 + $0x60] sm:$0xff]
      %v1093 = vld [vmem:[%s7 + $0x68] sm:$0xff]
      %v1094 = vld [vmem:[%s7 + $0x70] sm:$0xff]
      %v1095 = vld [vmem:[%s7 + $0x78] sm:$0xff]
      %v1096 = vld [vmem:[%s8] sm:$0x1]
      %v1098 = vlaneseq
      %v1099 = vshrl.u32 %v1098, 7
      %v1100 = vsub.s32 0, %v1099
      %v1101 = vrot.slane %v1096, %v1100
      %1103 = vmatprep.subr.mxu0 0.0
      %1104 = vmatpush1.msra.mxu0 %v1080
      %1105 = vmatprep.subr.mxu0 0.0
      %1106 = vmatpush1.msra.mxu0 %v1081
      %1107 = vmatprep.subr.mxu0 0.0
      %1108 = vmatpush1.msra.mxu0 %v1082
      %1109 = vmatprep.subr.mxu0 0.0
      %1110 = vmatpush1.msra.mxu0 %v1083
      %1111 = vmatprep.subr.mxu0 0.0
      %1112 = vmatpush1.msra.mxu0 %v1084
      %1113 = vmatprep.subr.mxu0 0.0
      %1114 = vmatpush1.msra.mxu0 %v1085
      %1115 = vmatprep.subr.mxu0 0.0
      %1116 = vmatpush1.msra.mxu0 %v1086
      %1117 = vmatprep.subr.mxu0 0.0
      %1118 = vmatpush1.msra.mxu0 %v1087
      %1119 = vmatprep.subr.mxu0 0.0
      %1120 = vmatpush1.msra.mxu0 %v1088
      %1121 = vmatprep.subr.mxu0 0.0
      %1122 = vmatpush1.msra.mxu0 %v1089
      %1123 = vmatprep.subr.mxu0 0.0
      %1124 = vmatpush1.msra.mxu0 %v1090
      %1125 = vmatprep.subr.mxu0 0.0
      %1126 = vmatpush1.msra.mxu0 %v1091
      %1127 = vmatprep.subr.mxu0 0.0
      %1128 = vmatpush1.msra.mxu0 %v1092
      %1129 = vmatprep.subr.mxu0 0.0
      %1130 = vmatpush1.msra.mxu0 %v1093
      %1131 = vmatprep.subr.mxu0 0.0
      %1132 = vmatpush1.msra.mxu0 %v1094
      %1133 = vmatprep.subr.mxu0 0.0
      %1134 = vmatpush1.msra.mxu0 %v1095
      %1135 = vmatprep.subr.mxu0 0.0
      %1136 = vmatpush1.msra.mxu0 0.0
      %1137 = vmatprep.subr.mxu0 0.0
      %1138 = vmatpush1.msra.mxu0 0.0
      %1139 = vmatprep.subr.mxu0 0.0
      %1140 = vmatpush1.msra.mxu0 0.0
      %1141 = vmatprep.subr.mxu0 0.0
      %1142 = vmatpush1.msra.mxu0 0.0
      %1143 = vmatprep.subr.mxu0 0.0
      %1144 = vmatpush1.msra.mxu0 0.0
      %1145 = vmatprep.subr.mxu0 0.0
      %1146 = vmatpush1.msra.mxu0 0.0
      %1147 = vmatprep.subr.mxu0 0.0
      %1148 = vmatpush1.msra.mxu0 0.0
      %1149 = vmatprep.subr.mxu0 0.0
      %1150 = vmatpush1.msra.mxu0 0.0
      %1151 = vmatprep.subr.mxu0 0.0
      %1152 = vmatpush1.msra.mxu0 0.0
      %1153 = vmatprep.subr.mxu0 0.0
      %1154 = vmatpush1.msra.mxu0 0.0
      %1155 = vmatprep.subr.mxu0 0.0
      %1156 = vmatpush1.msra.mxu0 0.0
      %1157 = vmatprep.subr.mxu0 0.0
      %1158 = vmatpush1.msra.mxu0 0.0
      %1159 = vmatprep.subr.mxu0 0.0
      %1160 = vmatpush1.msra.mxu0 0.0
      %1161 = vmatprep.subr.mxu0 0.0
      %1162 = vmatpush1.msra.mxu0 0.0
      %1163 = vmatprep.subr.mxu0 0.0
      %1164 = vmatpush1.msra.mxu0 0.0
      %1165 = vmatprep.subr.mxu0 0.0
      %1166 = vmatpush1.msra.mxu0 0.0
      %1167 = vmatprep.mubr.f32.mxu0 0.0
      %1168 = vmatmul.mubr.f32.gmra.mrb[0].mxu0 %v1064
      %v1169 = vpop.f32.mrb[0].mxu0
      %v1170 = vadd.f32 %v1101, %v1169
      %v1171 = vpop.f32.mrb[0].mxu0
      %1172 = vmatprep.mubr.f32.mxu0 0.0
      %1173 = vmatmul.mubr.f32.gmra.mrb[0].mxu0 %v1065
      %v1174 = vpop.f32.mrb[0].mxu0
      %v1175 = vadd.f32 %v1101, %v1174
      %v1176 = vpop.f32.mrb[0].mxu0
      %1177 = vmatprep.mubr.f32.mxu0 0.0
      %1178 = vmatmul.mubr.f32.gmra.mrb[0].mxu0 %v1066
      %v1179 = vpop.f32.mrb[0].mxu0
      %v1180 = vadd.f32 %v1101, %v1179
      %v1181 = vpop.f32.mrb[0].mxu0
      %1182 = vmatprep.mubr.f32.mxu0 0.0
      %1183 = vmatmul.mubr.f32.gmra.mrb[0].mxu0 %v1067
      %v1184 = vpop.f32.mrb[0].mxu0
      %v1185 = vadd.f32 %v1101, %v1184
      %v1186 = vpop.f32.mrb[0].mxu0
      %1187 = vmatprep.mubr.f32.mxu0 0.0
      %1188 = vmatmul.mubr.f32.gmra.mrb[0].mxu0 %v1068
      %v1189 = vpop.f32.mrb[0].mxu0
      %v1190 = vadd.f32 %v1101, %v1189
      %v1191 = vpop.f32.mrb[0].mxu0
      %1192 = vmatprep.mubr.f32.mxu0 0.0
      %1193 = vmatmul.mubr.f32.gmra.mrb[0].mxu0 %v1069
      %v1194 = vpop.f32.mrb[0].mxu0
      %v1195 = vadd.f32 %v1101, %v1194
      %v1196 = vpop.f32.mrb[0].mxu0
      %1197 = vmatprep.mubr.f32.mxu0 0.0
      %1198 = vmatmul.mubr.f32.gmra.mrb[0].mxu0 %v1070
      %v1199 = vpop.f32.mrb[0].mxu0
      %v1200 = vadd.f32 %v1101, %v1199
      %v1201 = vpop.f32.mrb[0].mxu0
      %1202 = vmatprep.mubr.f32.mxu0 0.0
      %1203 = vmatmul.mubr.f32.gmra.mrb[0].mxu0 %v1071
      %v1204 = vpop.f32.mrb[0].mxu0
      %v1205 = vadd.f32 %v1101, %v1204
      %v1206 = vpop.f32.mrb[0].mxu0
      %1207 = vmatprep.mubr.f32.mxu0 0.0
      %1208 = vmatmul.mubr.f32.gmra.mrb[0].mxu0 %v1072
      %v1209 = vpop.f32.mrb[0].mxu0
      %v1210 = vadd.f32 %v1101, %v1209
      %v1211 = vpop.f32.mrb[0].mxu0
      %1212 = vmatprep.mubr.f32.mxu0 0.0
      %1213 = vmatmul.mubr.f32.gmra.mrb[0].mxu0 %v1073
      %v1214 = vpop.f32.mrb[0].mxu0
      %v1215 = vadd.f32 %v1101, %v1214
      %v1216 = vpop.f32.mrb[0].mxu0
      %1217 = vmatprep.mubr.f32.mxu0 0.0
      %1218 = vmatmul.mubr.f32.gmra.mrb[0].mxu0 %v1074
      %v1219 = vpop.f32.mrb[0].mxu0
      %v1220 = vadd.f32 %v1101, %v1219
      %v1221 = vpop.f32.mrb[0].mxu0
      %1222 = vmatprep.mubr.f32.mxu0 0.0
      %1223 = vmatmul.mubr.f32.gmra.mrb[0].mxu0 %v1075
      %v1224 = vpop.f32.mrb[0].mxu0
      %v1225 = vadd.f32 %v1101, %v1224
      %v1226 = vpop.f32.mrb[0].mxu0
      %1227 = vmatprep.mubr.f32.mxu0 0.0
      %1228 = vmatmul.mubr.f32.gmra.mrb[0].mxu0 %v1076
      %v1229 = vpop.f32.mrb[0].mxu0
      %v1230 = vadd.f32 %v1101, %v1229
      %v1231 = vpop.f32.mrb[0].mxu0
      %1232 = vmatprep.mubr.f32.mxu0 0.0
      %1233 = vmatmul.mubr.f32.gmra.mrb[0].mxu0 %v1077
      %v1234 = vpop.f32.mrb[0].mxu0
      %v1235 = vadd.f32 %v1101, %v1234
      %v1236 = vpop.f32.mrb[0].mxu0
      %1237 = vmatprep.mubr.f32.mxu0 0.0
      %1238 = vmatmul.mubr.f32.gmra.mrb[0].mxu0 %v1078
      %v1239 = vpop.f32.mrb[0].mxu0
      %v1240 = vadd.f32 %v1101, %v1239
      %v1241 = vpop.f32.mrb[0].mxu0
      %1242 = vmatprep.mubr.f32.mxu0 0.0
      %1243 = vmatmul.mubr.f32.gmra.mrb[0].mxu0 %v1079
      %v1244 = vpop.f32.mrb[0].mxu0
      %v1245 = vadd.f32 %v1101, %v1244
      %v1246 = vpop.f32.mrb[0].mxu0
      %1247 = vdwg.mxu0
      %v1248 = vld [vmem:[%s410] sm:$0xff]
      %v1249 = vld [vmem:[%s410 + $0x8] sm:$0xff]
      %v1250 = vld [vmem:[%s410 + $0x10] sm:$0xff]
      %v1251 = vld [vmem:[%s410 + $0x18] sm:$0xff]
      %v1252 = vld [vmem:[%s410 + $0x20] sm:$0xff]
      %v1253 = vld [vmem:[%s410 + $0x28] sm:$0xff]
      %v1254 = vld [vmem:[%s410 + $0x30] sm:$0xff]
      %v1255 = vld [vmem:[%s410 + $0x38] sm:$0xff]
      %v1256 = vld [vmem:[%s410 + $0x40] sm:$0xff]
      %v1257 = vld [vmem:[%s410 + $0x48] sm:$0xff]
      %v1258 = vld [vmem:[%s410 + $0x50] sm:$0xff]
      %v1259 = vld [vmem:[%s410 + $0x58] sm:$0xff]
      %v1260 = vld [vmem:[%s410 + $0x60] sm:$0xff]
      %v1261 = vld [vmem:[%s410 + $0x68] sm:$0xff]
      %v1262 = vld [vmem:[%s410 + $0x70] sm:$0xff]
      %v1263 = vld [vmem:[%s410 + $0x78] sm:$0xff]
      %1265 = vset.pattern.permute.xlu0 0
      %1266 = vperm.xlu0 %1265, %v1248
      %v1267 = vpop.permute.xlu0 %1266
      %1270 = vset.pattern.permute.xlu0 0
      %1271 = vperm.xlu0 %1270, %v1249
      %v1272 = vpop.permute.xlu0 %1271
      %1275 = vset.pattern.permute.xlu0 0
      %1276 = vperm.xlu0 %1275, %v1250
      %v1277 = vpop.permute.xlu0 %1276
      %1280 = vset.pattern.permute.xlu0 0
      %1281 = vperm.xlu0 %1280, %v1251
      %v1282 = vpop.permute.xlu0 %1281
      %1285 = vset.pattern.permute.xlu0 0
      %1286 = vperm.xlu0 %1285, %v1252
      %v1287 = vpop.permute.xlu0 %1286
      %1290 = vset.pattern.permute.xlu0 0
      %1291 = vperm.xlu0 %1290, %v1253
      %v1292 = vpop.permute.xlu0 %1291
      %1295 = vset.pattern.permute.xlu0 0
      %1296 = vperm.xlu0 %1295, %v1254
      %v1297 = vpop.permute.xlu0 %1296
      %1300 = vset.pattern.permute.xlu0 0
      %1301 = vperm.xlu0 %1300, %v1255
      %v1302 = vpop.permute.xlu0 %1301
      %1305 = vset.pattern.permute.xlu0 0
      %1306 = vperm.xlu0 %1305, %v1256
      %v1307 = vpop.permute.xlu0 %1306
      %1310 = vset.pattern.permute.xlu0 0
      %1311 = vperm.xlu0 %1310, %v1257
      %v1312 = vpop.permute.xlu0 %1311
      %1315 = vset.pattern.permute.xlu0 0
      %1316 = vperm.xlu0 %1315, %v1258
      %v1317 = vpop.permute.xlu0 %1316
      %1320 = vset.pattern.permute.xlu0 0
      %1321 = vperm.xlu0 %1320, %v1259
      %v1322 = vpop.permute.xlu0 %1321
      %1325 = vset.pattern.permute.xlu0 0
      %1326 = vperm.xlu0 %1325, %v1260
      %v1327 = vpop.permute.xlu0 %1326
      %1330 = vset.pattern.permute.xlu0 0
      %1331 = vperm.xlu0 %1330, %v1261
      %v1332 = vpop.permute.xlu0 %1331
      %1335 = vset.pattern.permute.xlu0 0
      %1336 = vperm.xlu0 %1335, %v1262
      %v1337 = vpop.permute.xlu0 %1336
      %1340 = vset.pattern.permute.xlu0 0
      %1341 = vperm.xlu0 %1340, %v1263
      %v1342 = vpop.permute.xlu0 %1341
      %v1344 = vmul.f32 %v1170, %v1267
      %v1345 = vmul.f32 %v1175, %v1272
      %v1346 = vmul.f32 %v1180, %v1277
      %v1347 = vmul.f32 %v1185, %v1282
      %v1348 = vmul.f32 %v1190, %v1287
      %v1349 = vmul.f32 %v1195, %v1292
      %v1350 = vmul.f32 %v1200, %v1297
      %v1351 = vmul.f32 %v1205, %v1302
      %v1352 = vmul.f32 %v1210, %v1307
      %v1353 = vmul.f32 %v1215, %v1312
      %v1354 = vmul.f32 %v1220, %v1317
      %v1355 = vmul.f32 %v1225, %v1322
      %v1356 = vmul.f32 %v1230, %v1327
      %v1357 = vmul.f32 %v1235, %v1332
      %v1358 = vmul.f32 %v1240, %v1337
      %v1359 = vmul.f32 %v1245, %v1342
      %v1360 = vadd.f32 %v1344, %v1345
      %v1361 = vadd.f32 %v1360, %v1346
      %v1362 = vadd.f32 %v1361, %v1347
      %v1363 = vadd.f32 %v1362, %v1348
      %v1364 = vadd.f32 %v1363, %v1349
      %v1365 = vadd.f32 %v1364, %v1350
      %v1366 = vadd.f32 %v1365, %v1351
      %v1367 = vadd.f32 %v1366, %v1352
      %v1368 = vadd.f32 %v1367, %v1353
      %v1369 = vadd.f32 %v1368, %v1354
      %v1370 = vadd.f32 %v1369, %v1355
      %v1371 = vadd.f32 %v1370, %v1356
      %v1372 = vadd.f32 %v1371, %v1357
      %v1373 = vadd.f32 %v1372, %v1358
      %v1374 = vadd.f32 %v1373, %v1359
      %v1375 = vrot.slane %v1374, 4
      %v1376 = vadd.f32 %v1374, %v1375
      %v1377 = vrot.slane %v1376, 2
      %v1378 = vadd.f32 %v1376, %v1377
      %v1379 = vrot.slane %v1378, 1
      %v1380 = vadd.f32 %v1378, %v1379
      %v1381 = vmul.f32 %v1344, %v1344
      %v1382 = vmul.f32 %v1345, %v1345
      %v1383 = vmul.f32 %v1346, %v1346
      %v1384 = vmul.f32 %v1347, %v1347
      %v1385 = vmul.f32 %v1348, %v1348
      %v1386 = vmul.f32 %v1349, %v1349
      %v1387 = vmul.f32 %v1350, %v1350
      %v1388 = vmul.f32 %v1351, %v1351
      %v1389 = vmul.f32 %v1352, %v1352
      %v1390 = vmul.f32 %v1353, %v1353
      %v1391 = vmul.f32 %v1354, %v1354
      %v1392 = vmul.f32 %v1355, %v1355
      %v1393 = vmul.f32 %v1356, %v1356
      %v1394 = vmul.f32 %v1357, %v1357
      %v1395 = vmul.f32 %v1358, %v1358
      %v1396 = vmul.f32 %v1359, %v1359
      %v1397 = vadd.f32 %v1381, %v1382
      %v1398 = vadd.f32 %v1397, %v1383
      %v1399 = vadd.f32 %v1398, %v1384
      %v1400 = vadd.f32 %v1399, %v1385
      %v1401 = vadd.f32 %v1400, %v1386
      %v1402 = vadd.f32 %v1401, %v1387
      %v1403 = vadd.f32 %v1402, %v1388
      %v1404 = vadd.f32 %v1403, %v1389
      %v1405 = vadd.f32 %v1404, %v1390
      %v1406 = vadd.f32 %v1405, %v1391
      %v1407 = vadd.f32 %v1406, %v1392
      %v1408 = vadd.f32 %v1407, %v1393
      %v1409 = vadd.f32 %v1408, %v1394
      %v1410 = vadd.f32 %v1409, %v1395
      %v1411 = vadd.f32 %v1410, %v1396
      %v1412 = vrot.slane %v1411, 4
      %v1413 = vadd.f32 %v1411, %v1412
      %v1414 = vrot.slane %v1413, 2
      %v1415 = vadd.f32 %v1413, %v1414
      %v1416 = vrot.slane %v1415, 1
      %v1417 = vadd.f32 %v1415, %v1416
      %v1418 = vlaneseq
      %v1419 = vshrl.u32 %v1418, 7
      %vm1420 = vcmp.eq.s32.totalorder %v1419, 0
      %v1421 = vsel %vm1420, %v1380, 0.0
      %vm1422 = vcmp.eq.s32.totalorder %v1419, 1
      %v1423 = vsel %vm1422, %v1417, 0.0
      %v1424 = vadd.f32 %v1421, %v1423
      %1425 = vst [vmem:[%s421] sm:$0xff] %v1424
      %v1426 = vpack.c.bf16 %v1345, %v1344
      %v1427 = vpack.c.bf16 %v1347, %v1346
      %v1428 = vpack.c.bf16 %v1349, %v1348
      %v1429 = vpack.c.bf16 %v1351, %v1350
      %v1430 = vpack.c.bf16 %v1353, %v1352
      %v1431 = vpack.c.bf16 %v1355, %v1354
      %v1432 = vpack.c.bf16 %v1357, %v1356
      %v1433 = vpack.c.bf16 %v1359, %v1358
      %v1442 = vunpack.c.l.b16 %v1426
      %v1443 = vunpack.c.h.b16 %v1426
      %v1444 = vunpack.c.l.b16 %v1427
      %v1445 = vunpack.c.h.b16 %v1427
      %v1446 = vunpack.c.l.b16 %v1428
      %v1447 = vunpack.c.h.b16 %v1428
      %v1448 = vunpack.c.l.b16 %v1429
      %v1449 = vunpack.c.h.b16 %v1429
      %v1450 = vunpack.c.l.b16 %v1430
      %v1451 = vunpack.c.h.b16 %v1430
      %v1452 = vunpack.c.l.b16 %v1431
      %v1453 = vunpack.c.h.b16 %v1431
      %v1454 = vunpack.c.l.b16 %v1432
      %v1455 = vunpack.c.h.b16 %v1432
      %v1456 = vunpack.c.l.b16 %v1433
      %v1457 = vunpack.c.h.b16 %v1433
      %v1458 = vpack.c.b16 %v1442, %v1442
      %v1459 = vpack.c.b16 %v1443, %v1443
      %v1460 = vpack.c.b16 %v1444, %v1444
      %v1461 = vpack.c.b16 %v1445, %v1445
      %v1462 = vpack.c.b16 %v1446, %v1446
      %v1463 = vpack.c.b16 %v1447, %v1447
      %v1464 = vpack.c.b16 %v1448, %v1448
      %v1465 = vpack.c.b16 %v1449, %v1449
      %v1466 = vpack.c.b16 %v1450, %v1450
      %v1467 = vpack.c.b16 %v1451, %v1451
      %v1468 = vpack.c.b16 %v1452, %v1452
      %v1469 = vpack.c.b16 %v1453, %v1453
      %v1470 = vpack.c.b16 %v1454, %v1454
      %v1471 = vpack.c.b16 %v1455, %v1455
      %v1472 = vpack.c.b16 %v1456, %v1456
      %v1473 = vpack.c.b16 %v1457, %v1457
      %1490 = vst [vmem:[%s416] sm:$0xf] %v1458
      %1491 = vst [vmem:[%s416 + $0x4] sm:$0xf] %v1459
      %1492 = vst [vmem:[%s416 + $0x8] sm:$0xf] %v1460
      %1493 = vst [vmem:[%s416 + $0xc] sm:$0xf] %v1461
      %1494 = vst [vmem:[%s416 + $0x10] sm:$0xf] %v1462
      %1495 = vst [vmem:[%s416 + $0x14] sm:$0xf] %v1463
      %1496 = vst [vmem:[%s416 + $0x18] sm:$0xf] %v1464
      %1497 = vst [vmem:[%s416 + $0x1c] sm:$0xf] %v1465
      %1498 = vst [vmem:[%s416 + $0x20] sm:$0xf] %v1466
      %1499 = vst [vmem:[%s416 + $0x24] sm:$0xf] %v1467
      %1500 = vst [vmem:[%s416 + $0x28] sm:$0xf] %v1468
      %1501 = vst [vmem:[%s416 + $0x2c] sm:$0xf] %v1469
      %1502 = vst [vmem:[%s416 + $0x30] sm:$0xf] %v1470
      %1503 = vst [vmem:[%s416 + $0x34] sm:$0xf] %v1471
      %1504 = vst [vmem:[%s416 + $0x38] sm:$0xf] %v1472
      %1505 = vst [vmem:[%s416 + $0x3c] sm:$0xf] %v1473
      %s1506 = smul.u32 16, %s23
      %p1507 = scmp.lt.s32.totalorder %s1506, 47
      %s1508 = scalar_select %p1507, %s1506, 47
      %s1509 = smul.addr %s1508, 4
      %s1510 = scalar_lea.vmem %s9, %s1509
      %p1511 = scmp.lt.s32.totalorder %s23, 2
      %s1512 = scalar_select %p1511, %s23, 2
      %s1513 = smul.addr %s1512, 8
      %s1514 = scalar_lea.vmem %s10, %s1513
      // Predicated region
      $region57: #{gin_layer.2} parent=55 // pred_check
        %p1515 = pneg %p245
      $region58: #{gin_layer.2} parent=55 // pred_check_branch
        %1517 = sbr.rel (%p1515) target = $region60
      $region59: #{gin_layer.2} parent=55 // pred_region
        %s1518 = smul.u32 16, %s23
      $region60: #{gin_layer.2} parent=55 // pred_fallthru
        _
      // Predicated region
      $region61: #{gin_layer.2} parent=55 // pred_check
        %p1519 = pneg %p271
      $region62: #{gin_layer.2} parent=55 // pred_check_branch
        %1521 = sbr.rel (%p1519) target = $region64
      $region63: #{gin_layer.2} parent=55 // pred_region
        _
      $region64: #{gin_layer.2} parent=55 // pred_fallthru
        _
    $region56: #{gin_layer.2} parent=5 // pred_fallthru
      _
    %p1522 = scmp.le.s32.totalorder 2, %s18
    // Predicated region
    $region65: #{gin_layer.2} parent=5 // pred_check
      %p1523 = pneg %p1522
    $region66: #{gin_layer.2} parent=5 // pred_check_branch
      %1525 = sbr.rel (%p1523) target = $region68
    $region67: #{gin_layer.2} parent=5 // pred_region
      %s1526 = ssub.s32 %s18, 2
      // Predicated region
      $region69: #{gin_layer.2} parent=67 // pred_check
        %p1527 = pneg %p251
      $region70: #{gin_layer.2} parent=67 // pred_check_branch
        %1529 = sbr.rel (%p1527) target = $region72
      $region71: #{gin_layer.2} parent=67 // pred_region
        %s1530 = smul.u32 16, %s24
        %p1531 = scmp.lt.s32.totalorder %s1530, 47
        %s1532 = scalar_select %p1531, %s1530, 47
        %s1533 = smul.addr %s1532, 4
        %s1534 = scalar_lea.vmem %s9, %s1533
      $region72: #{gin_layer.2} parent=67 // pred_fallthru
        _
      // Predicated region
      $region73: #{gin_layer.2} parent=67 // pred_check
        %p1535 = pneg %p277
      $region74: #{gin_layer.2} parent=67 // pred_check_branch
        %1537 = sbr.rel (%p1535) target = $region76
      $region75: #{gin_layer.2} parent=67 // pred_region
        %p1538 = scmp.lt.s32.totalorder %s24, 2
        %s1539 = scalar_select %p1538, %s24, 2
        %s1540 = smul.addr %s1539, 8
        %s1541 = scalar_lea.vmem %s10, %s1540
      $region76: #{gin_layer.2} parent=67 // pred_fallthru
        _
    $region68: #{gin_layer.2} parent=5 // pred_fallthru
      _
  $region6: #{gin_layer.2} parent=0 // loop_footer
    %s22 = sadd.s32 1, %s18
  $region7: #{gin_layer.2} parent=0 // loop_footer_branch
    %17 = sbr.rel target = $region3
  $region8: #{gin_layer.2} parent=0 // loop_exit
    _

</llo_original>
